<compile_context>
chip_gen: v6e
topology: v6e:2x2x1
jax: 0.10.0
libtpu: 0.0.40
codegen_flags: <defaults>
</compile_context>

<pallas_src>
import functools
import numpy as np

import jax
import jax.numpy as jnp
from jax import lax
from jax.experimental import pallas as pl
from jax.experimental.pallas import tpu as pltpu


# ----------------------------------------------------------------------------
# helpers
# ----------------------------------------------------------------------------
_CP_SEQ = pltpu.CompilerParams(dimension_semantics=("arbitrary",))
_CP_PAR = pltpu.CompilerParams(dimension_semantics=("parallel",))


def _full_spec(shape):
    """Full-array block (block_shape == array shape) for a 1-D grid."""
    nd = len(shape)

    def imap(b):
        return (0,) * nd

    return pl.BlockSpec(tuple(shape), imap)


def _batched_spec(shape):
    """Block over the leading (branch) dim; rest full."""
    nd = len(shape)
    blk = (1,) + tuple(shape[1:])

    def imap(b):
        return (b,) + (0,) * (nd - 1)

    return pl.BlockSpec(blk, imap)


def _elu(x):
    return jnp.where(x > 0, x, jnp.exp(jnp.minimum(x, 0.0)) - 1.0)


def positional_encoding_np(seq_len, d_model):
    position = np.arange(seq_len)[:, np.newaxis]
    div_term = np.exp(np.arange(0, d_model, 2) * -(np.log(10000.0) / d_model))
    pe = np.zeros((seq_len, d_model))
    pe[:, 0::2] = np.sin(position * div_term)
    pe[:, 1::2] = np.cos(position * div_term)
    return pe.astype(np.float32)


# ----------------------------------------------------------------------------
# fused per-branch kernel: att-GAT -> E -> multi-head GAT -> out-GAT -> GCN
# ----------------------------------------------------------------------------
def _branch_kernel(h_ref, a_ref, dcol_ref, drow_ref,
                   att_w_ref, att_a1_ref, att_a2_ref,
                   heads_w_ref, heads_a1_ref, heads_a2_ref,
                   out_w_ref, out_a1_ref, out_a2_ref,
                   gcn_w_ref, out_ref,
                   *, alpha, delta, beta, eta, mu, nheads):
    h = h_ref[...]                        # (N, Fi) f32
    adj = a_ref[0]                        # (N, N)  f32
    h_bf = h.astype(jnp.bfloat16)
    neg_big = jnp.float32(-9e15)

    def masked_softmax_attn(wh, a1, a2):
        # e_ij = LeakyReLU((Wh a1)_i + (Wh a2)_j), masked to adj>0, row-softmax
        f1 = jnp.dot(wh, a1, preferred_element_type=jnp.float32)          # (N, 1)
        f2 = lax.dot_general(a2, wh, (((1,), (1,)), ((), ())),
                             preferred_element_type=jnp.float32)          # (1, N)
        e = f1 + f2
        e = jnp.where(e > 0, e, alpha * e)                                # LeakyReLU
        e = jnp.where(adj > 0, e, neg_big)                                # adjacency mask
        e = e - jnp.max(e, axis=1, keepdims=True)
        p = jnp.exp(e)
        inv = pl.reciprocal(jnp.sum(p, axis=1, keepdims=True), approx=True)
        return p * inv

    def aggregate(coef, wh):
        return jnp.dot(coef.astype(jnp.bfloat16), wh.astype(jnp.bfloat16),
                       preferred_element_type=jnp.float32)

    # --- att_layer: only its attention matrix is consumed -------------------
    wh0 = jnp.dot(h_bf, att_w_ref[...].astype(jnp.bfloat16),
                  preferred_element_type=jnp.float32)                      # (N, Fo)
    attn0 = masked_softmax_attn(wh0, att_a1_ref[...], att_a2_ref[...])
    e_adapt = delta * adj + beta * attn0          # adaptive E, stays in VMEM

    # --- multi-head GAT (concat heads) projected straight into out-GAT ------
    # wh_o = concat_h(head_feat_h) @ out_W  ==  sum_h head_feat_h @ out_W[h]
    n_nodes = h.shape[0]
    embed = out_w_ref.shape[2]
    wh_o = jnp.zeros((n_nodes, embed), jnp.float32)
    for hd in range(nheads):
        wh_h = jnp.dot(h_bf, heads_w_ref[hd].astype(jnp.bfloat16),
                       preferred_element_type=jnp.float32)                 # (N, hid)
        attn_h = masked_softmax_attn(wh_h, heads_a1_ref[hd], heads_a2_ref[hd])
        feat_h = _elu(aggregate(attn_h * e_adapt, wh_h))                   # (N, hid)
        wh_o = wh_o + jnp.dot(feat_h.astype(jnp.bfloat16),
                              out_w_ref[hd].astype(jnp.bfloat16),
                              preferred_element_type=jnp.float32)          # (N, embed)

    # --- output attention layer (concat=False) + outer ELU ------------------
    attn_o = masked_softmax_attn(wh_o, out_a1_ref[...], out_a2_ref[...])
    l_feat = _elu(aggregate(attn_o * e_adapt, wh_o))                       # (N, embed)

    # --- GCN branch:  Z = relu((D^-1/2 E D^-1/2) @ (H @ Wg)) -----------------
    a_norm = dcol_ref[0] * e_adapt * drow_ref[0]
    hw = jnp.dot(h_bf, gcn_w_ref[...].astype(jnp.bfloat16),
                 preferred_element_type=jnp.float32)
    z = jnp.maximum(aggregate(a_norm, hw), 0.0)

    # --- branch combine ------------------------------------------------------
    out_ref[0] = eta * l_feat + mu * z


def branch_group_forward(h, a_stack, d_stack, params, hp):
    """h: (N, Fi) shared node features; a_stack: (B, N, N); d_stack: (B, N)."""
    B, n, _ = a_stack.shape
    embed = params["gcn_W"].shape[1]

    dinv = jnp.power(d_stack, -0.5)
    dinv = jnp.where(jnp.isinf(dinv), 0.0, dinv)
    dcol = dinv.reshape(B, n, 1)
    drow = dinv.reshape(B, 1, n)

    heads = params["multi"]["heads"]
    heads_w = jnp.stack([p["W"] for p in heads])     # (nh, Fi, hid)
    heads_a1 = jnp.stack([p["a1"] for p in heads])   # (nh, hid, 1)
    heads_a2 = jnp.stack([p["a2"] for p in heads])   # (nh, 1, hid)
    nheads = heads_w.shape[0]
    hid = heads_w.shape[2]
    out_w = params["multi"]["out"]["W"].reshape(nheads, hid, embed)

    kernel = functools.partial(
        _branch_kernel, alpha=hp["alpha"], delta=hp["delta"], beta=hp["beta"],
        eta=hp["eta"], mu=hp["mu"], nheads=nheads)

    args = (h, a_stack, dcol, drow,
            params["att"]["W"], params["att"]["a1"], params["att"]["a2"],
            heads_w, heads_a1, heads_a2,
            out_w, params["multi"]["out"]["a1"], params["multi"]["out"]["a2"],
            params["gcn_W"])

    batched = {1, 2, 3}   # positions of per-branch arrays (a_stack, dcol, drow)
    in_specs = [(_batched_spec(a.shape) if i in batched else _full_spec(a.shape))
                for i, a in enumerate(args)]

    out = pl.pallas_call(
        kernel,
        grid=(B,),
        in_specs=in_specs,
        out_specs=pl.BlockSpec((1, n, embed), lambda b: (b, 0, 0)),
        out_shape=jax.ShapeDtypeStruct((B, n, embed), jnp.float32),
        compiler_params=_CP_PAR,
    )(*args)
    return out   # (B, N, embed)


# ----------------------------------------------------------------------------
# adaptive fusion + classifier kernels
# ----------------------------------------------------------------------------
def _fusion_kernel(f0_ref, f1_ref, f2_ref, f3_ref, wg_ref, out_ref):
    fs = [f0_ref[...], f1_ref[...], f2_ref[...], f3_ref[...]]
    # wg_ref: (4, E, 1) -> static per-branch gate vectors (no lane slicing)
    scores = [jnp.dot(fs[i], wg_ref[i], preferred_element_type=jnp.float32)
              for i in range(4)]                                   # 4 x (N, 1)
    m = jnp.maximum(jnp.maximum(scores[0], scores[1]),
                    jnp.maximum(scores[2], scores[3]))
    es = [jnp.exp(s - m) for s in scores]
    inv_den = pl.reciprocal(es[0] + es[1] + es[2] + es[3], approx=True)
    out_ref[...] = (es[0] * fs[0] + es[1] * fs[1]
                    + es[2] * fs[2] + es[3] * fs[3]) * inv_den


def fusion_layer(f0, f1, f2, f3, wg):
    n, e_dim = f0.shape
    wg_stack = jnp.transpose(wg).reshape(4, e_dim, 1)   # (4, E, 1)
    args = (f0, f1, f2, f3, wg_stack)
    return pl.pallas_call(
        _fusion_kernel,
        grid=(1,),
        in_specs=[_full_spec(a.shape) for a in args],
        out_specs=_full_spec((n, e_dim)),
        out_shape=jax.ShapeDtypeStruct((n, e_dim), jnp.float32),
        compiler_params=_CP_SEQ,
    )(*args)


def _classifier_kernel(x_ref, w_ref, b_ref, out_ref):
    logits = jnp.dot(x_ref[...].astype(jnp.bfloat16),
                     w_ref[...].astype(jnp.bfloat16),
                     preferred_element_type=jnp.float32) + b_ref[...]
    t = jnp.tanh(logits)
    t = t - jnp.max(t, axis=1, keepdims=True)
    p = jnp.exp(t)
    out_ref[...] = p * pl.reciprocal(jnp.sum(p, axis=1, keepdims=True), approx=True)


def classifier(x, w, b):
    bsz = x.shape[0]
    nclass = w.shape[1]
    args = (x, w, b)
    return pl.pallas_call(
        _classifier_kernel,
        grid=(1,),
        in_specs=[_full_spec(a.shape) for a in args],
        out_specs=_full_spec((bsz, nclass)),
        out_shape=jax.ShapeDtypeStruct((bsz, nclass), jnp.float32),
        compiler_params=_CP_SEQ,
    )(*args)


# ----------------------------------------------------------------------------
# document gather + positional encoding (batched, plain JAX glue)
# ----------------------------------------------------------------------------
def build_doc_features(r, doc_words_idxs, sub_doc_len, doc_thresh, embed_dim):
    b = len(doc_words_idxs)
    idx_tab = np.zeros((b, doc_thresh), np.int32)
    valid = np.zeros((b, doc_thresh, 1), np.float32)
    pe_tab = np.zeros((b, doc_thresh, embed_dim), np.float32)
    for i, d in enumerate(doc_words_idxs):
        length = min(len(d), doc_thresh)
        idx_tab[i, :length] = np.asarray(d[:length], np.int32) + sub_doc_len
        valid[i, :length, 0] = 1.0
        pe_tab[i, :length] = positional_encoding_np(len(d), embed_dim)[:length]
    gathered = r[jnp.asarray(idx_tab)]                       # (b, T, E) one XLA gather
    fv = (gathered + jnp.asarray(pe_tab)) * jnp.asarray(valid)
    return fv


# ----------------------------------------------------------------------------
# full forward
# ----------------------------------------------------------------------------
def ldagnn_forward(H, H_, A, A_1, A_2, A_3, D, D_, doc_words_idxs, sub_doc_len,
                   params, hp):
    embed_dim = hp["embed_dim"]
    doc_thresh = hp["doc_thresh"]

    # branch on word-doc graph (B=1) and the 3 sub-graph branches (B=3, batched)
    f0 = branch_group_forward(H, A[None], D[None], params, hp)[0]            # (N, E)
    f_sub = branch_group_forward(H_, jnp.stack([A_1, A_2, A_3]),
                                 jnp.stack([D_, D_, D_]), params, hp)        # (3, N_, E)

    n = f0.shape[0]
    r = fusion_layer(f0, f_sub[0, :n], f_sub[1, :n], f_sub[2, :n],
                     params["fusion_wg"])                                    # (N, E)

    b = len(doc_words_idxs)
    fv = build_doc_features(r, doc_words_idxs, sub_doc_len, doc_thresh, embed_dim)
    out = classifier(fv.reshape(b, -1), params["cls_W"], params["cls_b"])
    return out   # softmax(tanh(.)) computed inside the classifier kernel


# ----------------------------------------------------------------------------
# deterministic parameter init
# ----------------------------------------------------------------------------
def init_params(key, in_features, out_features, embed_dim, nheads, nclass, doc_thresh):
    keys = list(jax.random.split(key, 16))
    kit = iter(keys)

    def lin(kk, fi, fo):
        s = (2.0 / (fi + fo)) ** 0.5
        return jax.random.normal(kk, (fi, fo), jnp.float32) * s

    def gat_p(kk, fi, fo):
        k1, k2, k3 = jax.random.split(kk, 3)
        return {"W": lin(k1, fi, fo),
                "a1": jax.random.normal(k2, (fo, 1), jnp.float32) * 0.1,
                "a2": jax.random.normal(k3, (1, fo), jnp.float32) * 0.1}

    return {
        "att": gat_p(next(kit), in_features, out_features),
        "multi": {
            "heads": [gat_p(next(kit), in_features, embed_dim) for _ in range(nheads)],
            "out": gat_p(next(kit), nheads * embed_dim, embed_dim),
        },
        "gcn_W": lin(next(kit), in_features, embed_dim),
        "fusion_wg": jax.random.normal(next(kit), (embed_dim, 4), jnp.float32) * 0.1,
        "cls_W": lin(next(kit), doc_thresh * embed_dim, nclass),
        "cls_b": jnp.zeros((1, nclass), jnp.float32),
    }


# ----------------------------------------------------------------------------
# main
# ----------------------------------------------------------------------------
if __name__ == "__main__":
    key = jax.random.PRNGKey(0)
    k_h, k_h_, k_a, k_a1, k_a2, k_a3, k_p = jax.random.split(key, 7)

    # small, shape-consistent instance
    N, N_ = 48, 64                 # nodes in word-doc graph / sub-graphs
    in_features = 32
    out_features = 32
    embed_dim = 128
    nheads = 2
    nclass = 4
    doc_thresh = 16
    hp = dict(alpha=0.2, delta=0.5, beta=0.5, eta=0.6, mu=0.4,
              embed_dim=embed_dim, doc_thresh=doc_thresh)

    def make_adj(kk, n):
        m = (jax.random.uniform(kk, (n, n)) < 0.15).astype(jnp.float32)
        m = jnp.maximum(m, m.T)
        m = jnp.maximum(m, jnp.eye(n, dtype=jnp.float32))   # self loops
        return m

    H = jax.random.normal(k_h, (N, in_features), jnp.float32)
    H_ = jax.random.normal(k_h_, (N_, in_features), jnp.float32)
    A = make_adj(k_a, N)
    A_1 = make_adj(k_a1, N_)
    A_2 = make_adj(k_a2, N_)
    A_3 = make_adj(k_a3, N_)
    D = jnp.sum(A, axis=1)
    D_ = jnp.sum(A_1, axis=1)

    doc_words_idxs = [list(range(0, 10)), list(range(20, 32))]   # 2 documents
    sub_doc_len = 2

    params = init_params(k_p, in_features, out_features, embed_dim,
                         nheads, nclass, doc_thresh)

    out = ldagnn_forward(H, H_, A, A_1, A_2, A_3, D, D_,
                         doc_words_idxs, sub_doc_len, params, hp)
    out = jax.block_until_ready(out)
    assert out.shape == (len(doc_words_idxs), nclass)
    assert bool(jnp.all(jnp.isfinite(out)))
    print("KERNEL_OK")
</pallas_src>

<mosaic_0001>
module attributes {stable_mosaic.version = 11 : i64} {
  func.func @_branch_kernel(%arg0: i32, %arg1: memref<48x32xf32, #tpu.memory_space<vmem>>, %arg2: memref<1x48x48xf32, #tpu.memory_space<vmem>>, %arg3: memref<1x48x1xf32, #tpu.memory_space<vmem>>, %arg4: memref<1x1x48xf32, #tpu.memory_space<vmem>>, %arg5: memref<32x32xf32, #tpu.memory_space<vmem>>, %arg6: memref<32x1xf32, #tpu.memory_space<vmem>>, %arg7: memref<1x32xf32, #tpu.memory_space<vmem>>, %arg8: memref<2x32x128xf32, #tpu.memory_space<vmem>>, %arg9: memref<2x128x1xf32, #tpu.memory_space<vmem>>, %arg10: memref<2x1x128xf32, #tpu.memory_space<vmem>>, %arg11: memref<2x128x128xf32, #tpu.memory_space<vmem>>, %arg12: memref<128x1xf32, #tpu.memory_space<vmem>>, %arg13: memref<1x128xf32, #tpu.memory_space<vmem>>, %arg14: memref<32x128xf32, #tpu.memory_space<vmem>>, %arg15: memref<1x48x128xf32, #tpu.memory_space<vmem>>) attributes {dimension_semantics = [#tpu.dimension_semantics<parallel>], iteration_bounds = array<i64: 1>, scalar_prefetch = 0 : i64, scratch_operands = 0 : i64, tpu.core_type = #tpu.core_type<tc>, window_params = [{pipeline_mode = #tpu.pipeline_mode<synchronous>, transform_indices = @transform_0, window_bounds = array<i64: 48, 32>}, {transform_indices = @transform_1, window_bounds = array<i64: 1, 48, 48>}, {transform_indices = @transform_2, window_bounds = array<i64: 1, 48, 1>}, {transform_indices = @transform_3, window_bounds = array<i64: 1, 1, 48>}, {pipeline_mode = #tpu.pipeline_mode<synchronous>, transform_indices = @transform_4, window_bounds = array<i64: 32, 32>}, {pipeline_mode = #tpu.pipeline_mode<synchronous>, transform_indices = @transform_5, window_bounds = array<i64: 32, 1>}, {pipeline_mode = #tpu.pipeline_mode<synchronous>, transform_indices = @transform_6, window_bounds = array<i64: 1, 32>}, {pipeline_mode = #tpu.pipeline_mode<synchronous>, transform_indices = @transform_7, window_bounds = array<i64: 2, 32, 128>}, {pipeline_mode = #tpu.pipeline_mode<synchronous>, transform_indices = @transform_8, window_bounds = array<i64: 2, 128, 1>}, {pipeline_mode = #tpu.pipeline_mode<synchronous>, transform_indices = @transform_9, window_bounds = array<i64: 2, 1, 128>}, {pipeline_mode = #tpu.pipeline_mode<synchronous>, transform_indices = @transform_10, window_bounds = array<i64: 2, 128, 128>}, {pipeline_mode = #tpu.pipeline_mode<synchronous>, transform_indices = @transform_11, window_bounds = array<i64: 128, 1>}, {pipeline_mode = #tpu.pipeline_mode<synchronous>, transform_indices = @transform_12, window_bounds = array<i64: 1, 128>}, {pipeline_mode = #tpu.pipeline_mode<synchronous>, transform_indices = @transform_13, window_bounds = array<i64: 32, 128>}, {transform_indices = @transform_14, window_bounds = array<i64: 1, 48, 128>}]} {
    %c0 = arith.constant 0 : index
    %c0_0 = arith.constant 0 : index
    %0 = vector.load %arg1[%c0, %c0_0] : memref<48x32xf32, #tpu.memory_space<vmem>>, vector<48x32xf32>
    %c0_1 = arith.constant 0 : index
    %c0_2 = arith.constant 0 : index
    %c0_3 = arith.constant 0 : index
    %1 = vector.load %arg2[%c0_1, %c0_2, %c0_3] : memref<1x48x48xf32, #tpu.memory_space<vmem>>, vector<1x48x48xf32>
    %2 = vector.shape_cast %1 : vector<1x48x48xf32> to vector<48x48xf32>
    %3 = arith.truncf %0 : vector<48x32xf32> to vector<48x32xbf16>
    %c0_4 = arith.constant 0 : index
    %c0_5 = arith.constant 0 : index
    %4 = vector.load %arg5[%c0_4, %c0_5] : memref<32x32xf32, #tpu.memory_space<vmem>>, vector<32x32xf32>
    %5 = arith.truncf %4 : vector<32x32xf32> to vector<32x32xbf16>
    %cst = arith.constant dense<0.000000e+00> : vector<48x32xf32>
    %6 = tpu.matmul %3, %5, %cst {dimension_numbers = #tpu.dot_dimension_numbers<[1], [0], [0], [1], [0, 0, 1, 1], [], []>} : vector<48x32xbf16>, vector<32x32xbf16>, vector<48x32xf32> -> vector<48x32xf32>
    %c0_6 = arith.constant 0 : index
    %c0_7 = arith.constant 0 : index
    %7 = vector.load %arg6[%c0_6, %c0_7] : memref<32x1xf32, #tpu.memory_space<vmem>>, vector<32x1xf32>
    %c0_8 = arith.constant 0 : index
    %c0_9 = arith.constant 0 : index
    %8 = vector.load %arg7[%c0_8, %c0_9] : memref<1x32xf32, #tpu.memory_space<vmem>>, vector<1x32xf32>
    %cst_10 = arith.constant dense<0.000000e+00> : vector<48x1xf32>
    %9 = tpu.matmul %6, %7, %cst_10 {dimension_numbers = #tpu.dot_dimension_numbers<[1], [0], [0], [1], [0, 0, 1, 1], [], []>} : vector<48x32xf32>, vector<32x1xf32>, vector<48x1xf32> -> vector<48x1xf32>
    %cst_11 = arith.constant dense<0.000000e+00> : vector<1x48xf32>
    %10 = tpu.matmul %8, %6, %cst_11 {dimension_numbers = #tpu.dot_dimension_numbers<[1], [1], [0], [0], [0, 0, 1, 0], [], []>} : vector<1x32xf32>, vector<48x32xf32>, vector<1x48xf32> -> vector<1x48xf32>
    %11 = vector.broadcast %9 : vector<48x1xf32> to vector<48x48xf32>
    %12 = vector.broadcast %10 : vector<1x48xf32> to vector<48x48xf32>
    %13 = arith.addf %11, %12 : vector<48x48xf32>
    %cst_12 = arith.constant 0.000000e+00 : f32
    %14 = vector.broadcast %cst_12 : f32 to vector<48x48xf32>
    %15 = arith.cmpf ogt, %13, %14 : vector<48x48xf32>
    %cst_13 = arith.constant 2.000000e-01 : f32
    %16 = vector.broadcast %cst_13 : f32 to vector<48x48xf32>
    %17 = arith.mulf %16, %13 : vector<48x48xf32>
    %18 = arith.select %15, %13, %17 : vector<48x48xi1>, vector<48x48xf32>
    %cst_14 = arith.constant 0.000000e+00 : f32
    %19 = vector.broadcast %cst_14 : f32 to vector<48x48xf32>
    %20 = arith.cmpf ogt, %2, %19 : vector<48x48xf32>
    %cst_15 = arith.constant -9.000000e+15 : f32
    %21 = vector.broadcast %cst_15 : f32 to vector<48x48xf32>
    %22 = arith.select %20, %18, %21 : vector<48x48xi1>, vector<48x48xf32>
    %cst_16 = arith.constant dense<0xFF800000> : vector<48xf32>
    %23 = vector.multi_reduction <maximumf>, %22, %cst_16 [1] : vector<48x48xf32> to vector<48xf32>
    %24 = vector.shape_cast %23 : vector<48xf32> to vector<48x1xf32>
    %25 = vector.broadcast %24 : vector<48x1xf32> to vector<48x48xf32>
    %26 = arith.subf %22, %25 : vector<48x48xf32>
    %27 = math.exp %26 : vector<48x48xf32>
    %cst_17 = arith.constant dense<0.000000e+00> : vector<48xf32>
    %28 = vector.multi_reduction <add>, %27, %cst_17 [1] : vector<48x48xf32> to vector<48xf32>
    %29 = vector.shape_cast %28 : vector<48xf32> to vector<48x1xf32>
    %30 = tpu.reciprocal %29 {approx = true} : vector<48x1xf32> -> vector<48x1xf32>
    %31 = vector.broadcast %30 : vector<48x1xf32> to vector<48x48xf32>
    %32 = arith.mulf %27, %31 : vector<48x48xf32>
    %cst_18 = arith.constant 5.000000e-01 : f32
    %33 = vector.broadcast %cst_18 : f32 to vector<48x48xf32>
    %34 = arith.mulf %33, %2 : vector<48x48xf32>
    %cst_19 = arith.constant 5.000000e-01 : f32
    %35 = vector.broadcast %cst_19 : f32 to vector<48x48xf32>
    %36 = arith.mulf %35, %32 : vector<48x48xf32>
    %37 = arith.addf %34, %36 : vector<48x48xf32>
    %cst_20 = arith.constant 0.000000e+00 : f32
    %38 = vector.broadcast %cst_20 : f32 to vector<48x128xf32>
    %c0_21 = arith.constant 0 : index
    %c0_22 = arith.constant 0 : index
    %c0_23 = arith.constant 0 : index
    %39 = vector.load %arg8[%c0_21, %c0_22, %c0_23] : memref<2x32x128xf32, #tpu.memory_space<vmem>>, vector<1x32x128xf32>
    %40 = vector.shape_cast %39 : vector<1x32x128xf32> to vector<32x128xf32>
    %41 = arith.truncf %40 : vector<32x128xf32> to vector<32x128xbf16>
    %cst_24 = arith.constant dense<0.000000e+00> : vector<48x128xf32>
    %42 = tpu.matmul %3, %41, %cst_24 {dimension_numbers = #tpu.dot_dimension_numbers<[1], [0], [0], [1], [0, 0, 1, 1], [], []>} : vector<48x32xbf16>, vector<32x128xbf16>, vector<48x128xf32> -> vector<48x128xf32>
    %c0_25 = arith.constant 0 : index
    %c0_26 = arith.constant 0 : index
    %c0_27 = arith.constant 0 : index
    %43 = vector.load %arg9[%c0_25, %c0_26, %c0_27] : memref<2x128x1xf32, #tpu.memory_space<vmem>>, vector<1x128x1xf32>
    %44 = vector.shape_cast %43 : vector<1x128x1xf32> to vector<128x1xf32>
    %c0_28 = arith.constant 0 : index
    %c0_29 = arith.constant 0 : index
    %c0_30 = arith.constant 0 : index
    %45 = vector.load %arg10[%c0_28, %c0_29, %c0_30] : memref<2x1x128xf32, #tpu.memory_space<vmem>>, vector<1x1x128xf32>
    %46 = vector.shape_cast %45 : vector<1x1x128xf32> to vector<1x128xf32>
    %cst_31 = arith.constant dense<0.000000e+00> : vector<48x1xf32>
    %47 = tpu.matmul %42, %44, %cst_31 {dimension_numbers = #tpu.dot_dimension_numbers<[1], [0], [0], [1], [0, 0, 1, 1], [], []>} : vector<48x128xf32>, vector<128x1xf32>, vector<48x1xf32> -> vector<48x1xf32>
    %cst_32 = arith.constant dense<0.000000e+00> : vector<1x48xf32>
    %48 = tpu.matmul %46, %42, %cst_32 {dimension_numbers = #tpu.dot_dimension_numbers<[1], [1], [0], [0], [0, 0, 1, 0], [], []>} : vector<1x128xf32>, vector<48x128xf32>, vector<1x48xf32> -> vector<1x48xf32>
    %49 = vector.broadcast %47 : vector<48x1xf32> to vector<48x48xf32>
    %50 = vector.broadcast %48 : vector<1x48xf32> to vector<48x48xf32>
    %51 = arith.addf %49, %50 : vector<48x48xf32>
    %cst_33 = arith.constant 0.000000e+00 : f32
    %52 = vector.broadcast %cst_33 : f32 to vector<48x48xf32>
    %53 = arith.cmpf ogt, %51, %52 : vector<48x48xf32>
    %cst_34 = arith.constant 2.000000e-01 : f32
    %54 = vector.broadcast %cst_34 : f32 to vector<48x48xf32>
    %55 = arith.mulf %54, %51 : vector<48x48xf32>
    %56 = arith.select %53, %51, %55 : vector<48x48xi1>, vector<48x48xf32>
    %cst_35 = arith.constant 0.000000e+00 : f32
    %57 = vector.broadcast %cst_35 : f32 to vector<48x48xf32>
    %58 = arith.cmpf ogt, %2, %57 : vector<48x48xf32>
    %cst_36 = arith.constant -9.000000e+15 : f32
    %59 = vector.broadcast %cst_36 : f32 to vector<48x48xf32>
    %60 = arith.select %58, %56, %59 : vector<48x48xi1>, vector<48x48xf32>
    %cst_37 = arith.constant dense<0xFF800000> : vector<48xf32>
    %61 = vector.multi_reduction <maximumf>, %60, %cst_37 [1] : vector<48x48xf32> to vector<48xf32>
    %62 = vector.shape_cast %61 : vector<48xf32> to vector<48x1xf32>
    %63 = vector.broadcast %62 : vector<48x1xf32> to vector<48x48xf32>
    %64 = arith.subf %60, %63 : vector<48x48xf32>
    %65 = math.exp %64 : vector<48x48xf32>
    %cst_38 = arith.constant dense<0.000000e+00> : vector<48xf32>
    %66 = vector.multi_reduction <add>, %65, %cst_38 [1] : vector<48x48xf32> to vector<48xf32>
    %67 = vector.shape_cast %66 : vector<48xf32> to vector<48x1xf32>
    %68 = tpu.reciprocal %67 {approx = true} : vector<48x1xf32> -> vector<48x1xf32>
    %69 = vector.broadcast %68 : vector<48x1xf32> to vector<48x48xf32>
    %70 = arith.mulf %65, %69 : vector<48x48xf32>
    %71 = arith.mulf %70, %37 : vector<48x48xf32>
    %72 = arith.truncf %71 : vector<48x48xf32> to vector<48x48xbf16>
    %73 = arith.truncf %42 : vector<48x128xf32> to vector<48x128xbf16>
    %cst_39 = arith.constant dense<0.000000e+00> : vector<48x128xf32>
    %74 = tpu.matmul %72, %73, %cst_39 {dimension_numbers = #tpu.dot_dimension_numbers<[1], [0], [0], [1], [0, 0, 1, 1], [], []>} : vector<48x48xbf16>, vector<48x128xbf16>, vector<48x128xf32> -> vector<48x128xf32>
    %cst_40 = arith.constant 0.000000e+00 : f32
    %75 = vector.broadcast %cst_40 : f32 to vector<48x128xf32>
    %76 = arith.cmpf ogt, %74, %75 : vector<48x128xf32>
    %cst_41 = arith.constant 0.000000e+00 : f32
    %77 = vector.broadcast %cst_41 : f32 to vector<48x128xf32>
    %78 = arith.minimumf %74, %77 : vector<48x128xf32>
    %79 = math.exp %78 : vector<48x128xf32>
    %cst_42 = arith.constant 1.000000e+00 : f32
    %80 = vector.broadcast %cst_42 : f32 to vector<48x128xf32>
    %81 = arith.subf %79, %80 : vector<48x128xf32>
    %82 = arith.select %76, %74, %81 : vector<48x128xi1>, vector<48x128xf32>
    %83 = arith.truncf %82 : vector<48x128xf32> to vector<48x128xbf16>
    %c0_43 = arith.constant 0 : index
    %c0_44 = arith.constant 0 : index
    %c0_45 = arith.constant 0 : index
    %84 = vector.load %arg11[%c0_43, %c0_44, %c0_45] : memref<2x128x128xf32, #tpu.memory_space<vmem>>, vector<1x128x128xf32>
    %85 = vector.shape_cast %84 : vector<1x128x128xf32> to vector<128x128xf32>
    %86 = arith.truncf %85 : vector<128x128xf32> to vector<128x128xbf16>
    %cst_46 = arith.constant dense<0.000000e+00> : vector<48x128xf32>
    %87 = tpu.matmul %83, %86, %cst_46 {dimension_numbers = #tpu.dot_dimension_numbers<[1], [0], [0], [1], [0, 0, 1, 1], [], []>} : vector<48x128xbf16>, vector<128x128xbf16>, vector<48x128xf32> -> vector<48x128xf32>
    %88 = arith.addf %38, %87 : vector<48x128xf32>
    %c1 = arith.constant 1 : index
    %c0_47 = arith.constant 0 : index
    %c0_48 = arith.constant 0 : index
    %89 = vector.load %arg8[%c1, %c0_47, %c0_48] : memref<2x32x128xf32, #tpu.memory_space<vmem>>, vector<1x32x128xf32>
    %90 = vector.shape_cast %89 : vector<1x32x128xf32> to vector<32x128xf32>
    %91 = arith.truncf %90 : vector<32x128xf32> to vector<32x128xbf16>
    %cst_49 = arith.constant dense<0.000000e+00> : vector<48x128xf32>
    %92 = tpu.matmul %3, %91, %cst_49 {dimension_numbers = #tpu.dot_dimension_numbers<[1], [0], [0], [1], [0, 0, 1, 1], [], []>} : vector<48x32xbf16>, vector<32x128xbf16>, vector<48x128xf32> -> vector<48x128xf32>
    %c1_50 = arith.constant 1 : index
    %c0_51 = arith.constant 0 : index
    %c0_52 = arith.constant 0 : index
    %93 = vector.load %arg9[%c1_50, %c0_51, %c0_52] : memref<2x128x1xf32, #tpu.memory_space<vmem>>, vector<1x128x1xf32>
    %94 = vector.shape_cast %93 : vector<1x128x1xf32> to vector<128x1xf32>
    %c1_53 = arith.constant 1 : index
    %c0_54 = arith.constant 0 : index
    %c0_55 = arith.constant 0 : index
    %95 = vector.load %arg10[%c1_53, %c0_54, %c0_55] : memref<2x1x128xf32, #tpu.memory_space<vmem>>, vector<1x1x128xf32>
    %96 = vector.shape_cast %95 : vector<1x1x128xf32> to vector<1x128xf32>
    %cst_56 = arith.constant dense<0.000000e+00> : vector<48x1xf32>
    %97 = tpu.matmul %92, %94, %cst_56 {dimension_numbers = #tpu.dot_dimension_numbers<[1], [0], [0], [1], [0, 0, 1, 1], [], []>} : vector<48x128xf32>, vector<128x1xf32>, vector<48x1xf32> -> vector<48x1xf32>
    %cst_57 = arith.constant dense<0.000000e+00> : vector<1x48xf32>
    %98 = tpu.matmul %96, %92, %cst_57 {dimension_numbers = #tpu.dot_dimension_numbers<[1], [1], [0], [0], [0, 0, 1, 0], [], []>} : vector<1x128xf32>, vector<48x128xf32>, vector<1x48xf32> -> vector<1x48xf32>
    %99 = vector.broadcast %97 : vector<48x1xf32> to vector<48x48xf32>
    %100 = vector.broadcast %98 : vector<1x48xf32> to vector<48x48xf32>
    %101 = arith.addf %99, %100 : vector<48x48xf32>
    %cst_58 = arith.constant 0.000000e+00 : f32
    %102 = vector.broadcast %cst_58 : f32 to vector<48x48xf32>
    %103 = arith.cmpf ogt, %101, %102 : vector<48x48xf32>
    %cst_59 = arith.constant 2.000000e-01 : f32
    %104 = vector.broadcast %cst_59 : f32 to vector<48x48xf32>
    %105 = arith.mulf %104, %101 : vector<48x48xf32>
    %106 = arith.select %103, %101, %105 : vector<48x48xi1>, vector<48x48xf32>
    %cst_60 = arith.constant 0.000000e+00 : f32
    %107 = vector.broadcast %cst_60 : f32 to vector<48x48xf32>
    %108 = arith.cmpf ogt, %2, %107 : vector<48x48xf32>
    %cst_61 = arith.constant -9.000000e+15 : f32
    %109 = vector.broadcast %cst_61 : f32 to vector<48x48xf32>
    %110 = arith.select %108, %106, %109 : vector<48x48xi1>, vector<48x48xf32>
    %cst_62 = arith.constant dense<0xFF800000> : vector<48xf32>
    %111 = vector.multi_reduction <maximumf>, %110, %cst_62 [1] : vector<48x48xf32> to vector<48xf32>
    %112 = vector.shape_cast %111 : vector<48xf32> to vector<48x1xf32>
    %113 = vector.broadcast %112 : vector<48x1xf32> to vector<48x48xf32>
    %114 = arith.subf %110, %113 : vector<48x48xf32>
    %115 = math.exp %114 : vector<48x48xf32>
    %cst_63 = arith.constant dense<0.000000e+00> : vector<48xf32>
    %116 = vector.multi_reduction <add>, %115, %cst_63 [1] : vector<48x48xf32> to vector<48xf32>
    %117 = vector.shape_cast %116 : vector<48xf32> to vector<48x1xf32>
    %118 = tpu.reciprocal %117 {approx = true} : vector<48x1xf32> -> vector<48x1xf32>
    %119 = vector.broadcast %118 : vector<48x1xf32> to vector<48x48xf32>
    %120 = arith.mulf %115, %119 : vector<48x48xf32>
    %121 = arith.mulf %120, %37 : vector<48x48xf32>
    %122 = arith.truncf %121 : vector<48x48xf32> to vector<48x48xbf16>
    %123 = arith.truncf %92 : vector<48x128xf32> to vector<48x128xbf16>
    %cst_64 = arith.constant dense<0.000000e+00> : vector<48x128xf32>
    %124 = tpu.matmul %122, %123, %cst_64 {dimension_numbers = #tpu.dot_dimension_numbers<[1], [0], [0], [1], [0, 0, 1, 1], [], []>} : vector<48x48xbf16>, vector<48x128xbf16>, vector<48x128xf32> -> vector<48x128xf32>
    %cst_65 = arith.constant 0.000000e+00 : f32
    %125 = vector.broadcast %cst_65 : f32 to vector<48x128xf32>
    %126 = arith.cmpf ogt, %124, %125 : vector<48x128xf32>
    %cst_66 = arith.constant 0.000000e+00 : f32
    %127 = vector.broadcast %cst_66 : f32 to vector<48x128xf32>
    %128 = arith.minimumf %124, %127 : vector<48x128xf32>
    %129 = math.exp %128 : vector<48x128xf32>
    %cst_67 = arith.constant 1.000000e+00 : f32
    %130 = vector.broadcast %cst_67 : f32 to vector<48x128xf32>
    %131 = arith.subf %129, %130 : vector<48x128xf32>
    %132 = arith.select %126, %124, %131 : vector<48x128xi1>, vector<48x128xf32>
    %133 = arith.truncf %132 : vector<48x128xf32> to vector<48x128xbf16>
    %c1_68 = arith.constant 1 : index
    %c0_69 = arith.constant 0 : index
    %c0_70 = arith.constant 0 : index
    %134 = vector.load %arg11[%c1_68, %c0_69, %c0_70] : memref<2x128x128xf32, #tpu.memory_space<vmem>>, vector<1x128x128xf32>
    %135 = vector.shape_cast %134 : vector<1x128x128xf32> to vector<128x128xf32>
    %136 = arith.truncf %135 : vector<128x128xf32> to vector<128x128xbf16>
    %cst_71 = arith.constant dense<0.000000e+00> : vector<48x128xf32>
    %137 = tpu.matmul %133, %136, %cst_71 {dimension_numbers = #tpu.dot_dimension_numbers<[1], [0], [0], [1], [0, 0, 1, 1], [], []>} : vector<48x128xbf16>, vector<128x128xbf16>, vector<48x128xf32> -> vector<48x128xf32>
    %138 = arith.addf %88, %137 : vector<48x128xf32>
    %c0_72 = arith.constant 0 : index
    %c0_73 = arith.constant 0 : index
    %139 = vector.load %arg12[%c0_72, %c0_73] : memref<128x1xf32, #tpu.memory_space<vmem>>, vector<128x1xf32>
    %c0_74 = arith.constant 0 : index
    %c0_75 = arith.constant 0 : index
    %140 = vector.load %arg13[%c0_74, %c0_75] : memref<1x128xf32, #tpu.memory_space<vmem>>, vector<1x128xf32>
    %cst_76 = arith.constant dense<0.000000e+00> : vector<48x1xf32>
    %141 = tpu.matmul %138, %139, %cst_76 {dimension_numbers = #tpu.dot_dimension_numbers<[1], [0], [0], [1], [0, 0, 1, 1], [], []>} : vector<48x128xf32>, vector<128x1xf32>, vector<48x1xf32> -> vector<48x1xf32>
    %cst_77 = arith.constant dense<0.000000e+00> : vector<1x48xf32>
    %142 = tpu.matmul %140, %138, %cst_77 {dimension_numbers = #tpu.dot_dimension_numbers<[1], [1], [0], [0], [0, 0, 1, 0], [], []>} : vector<1x128xf32>, vector<48x128xf32>, vector<1x48xf32> -> vector<1x48xf32>
    %143 = vector.broadcast %141 : vector<48x1xf32> to vector<48x48xf32>
    %144 = vector.broadcast %142 : vector<1x48xf32> to vector<48x48xf32>
    %145 = arith.addf %143, %144 : vector<48x48xf32>
    %cst_78 = arith.constant 0.000000e+00 : f32
    %146 = vector.broadcast %cst_78 : f32 to vector<48x48xf32>
    %147 = arith.cmpf ogt, %145, %146 : vector<48x48xf32>
    %cst_79 = arith.constant 2.000000e-01 : f32
    %148 = vector.broadcast %cst_79 : f32 to vector<48x48xf32>
    %149 = arith.mulf %148, %145 : vector<48x48xf32>
    %150 = arith.select %147, %145, %149 : vector<48x48xi1>, vector<48x48xf32>
    %cst_80 = arith.constant 0.000000e+00 : f32
    %151 = vector.broadcast %cst_80 : f32 to vector<48x48xf32>
    %152 = arith.cmpf ogt, %2, %151 : vector<48x48xf32>
    %cst_81 = arith.constant -9.000000e+15 : f32
    %153 = vector.broadcast %cst_81 : f32 to vector<48x48xf32>
    %154 = arith.select %152, %150, %153 : vector<48x48xi1>, vector<48x48xf32>
    %cst_82 = arith.constant dense<0xFF800000> : vector<48xf32>
    %155 = vector.multi_reduction <maximumf>, %154, %cst_82 [1] : vector<48x48xf32> to vector<48xf32>
    %156 = vector.shape_cast %155 : vector<48xf32> to vector<48x1xf32>
    %157 = vector.broadcast %156 : vector<48x1xf32> to vector<48x48xf32>
    %158 = arith.subf %154, %157 : vector<48x48xf32>
    %159 = math.exp %158 : vector<48x48xf32>
    %cst_83 = arith.constant dense<0.000000e+00> : vector<48xf32>
    %160 = vector.multi_reduction <add>, %159, %cst_83 [1] : vector<48x48xf32> to vector<48xf32>
    %161 = vector.shape_cast %160 : vector<48xf32> to vector<48x1xf32>
    %162 = tpu.reciprocal %161 {approx = true} : vector<48x1xf32> -> vector<48x1xf32>
    %163 = vector.broadcast %162 : vector<48x1xf32> to vector<48x48xf32>
    %164 = arith.mulf %159, %163 : vector<48x48xf32>
    %165 = arith.mulf %164, %37 : vector<48x48xf32>
    %166 = arith.truncf %165 : vector<48x48xf32> to vector<48x48xbf16>
    %167 = arith.truncf %138 : vector<48x128xf32> to vector<48x128xbf16>
    %cst_84 = arith.constant dense<0.000000e+00> : vector<48x128xf32>
    %168 = tpu.matmul %166, %167, %cst_84 {dimension_numbers = #tpu.dot_dimension_numbers<[1], [0], [0], [1], [0, 0, 1, 1], [], []>} : vector<48x48xbf16>, vector<48x128xbf16>, vector<48x128xf32> -> vector<48x128xf32>
    %cst_85 = arith.constant 0.000000e+00 : f32
    %169 = vector.broadcast %cst_85 : f32 to vector<48x128xf32>
    %170 = arith.cmpf ogt, %168, %169 : vector<48x128xf32>
    %cst_86 = arith.constant 0.000000e+00 : f32
    %171 = vector.broadcast %cst_86 : f32 to vector<48x128xf32>
    %172 = arith.minimumf %168, %171 : vector<48x128xf32>
    %173 = math.exp %172 : vector<48x128xf32>
    %cst_87 = arith.constant 1.000000e+00 : f32
    %174 = vector.broadcast %cst_87 : f32 to vector<48x128xf32>
    %175 = arith.subf %173, %174 : vector<48x128xf32>
    %176 = arith.select %170, %168, %175 : vector<48x128xi1>, vector<48x128xf32>
    %c0_88 = arith.constant 0 : index
    %c0_89 = arith.constant 0 : index
    %c0_90 = arith.constant 0 : index
    %177 = vector.load %arg3[%c0_88, %c0_89, %c0_90] : memref<1x48x1xf32, #tpu.memory_space<vmem>>, vector<1x48x1xf32>
    %178 = vector.shape_cast %177 : vector<1x48x1xf32> to vector<48x1xf32>
    %179 = vector.broadcast %178 : vector<48x1xf32> to vector<48x48xf32>
    %180 = arith.mulf %179, %37 : vector<48x48xf32>
    %c0_91 = arith.constant 0 : index
    %c0_92 = arith.constant 0 : index
    %c0_93 = arith.constant 0 : index
    %181 = vector.load %arg4[%c0_91, %c0_92, %c0_93] : memref<1x1x48xf32, #tpu.memory_space<vmem>>, vector<1x1x48xf32>
    %182 = vector.shape_cast %181 : vector<1x1x48xf32> to vector<1x48xf32>
    %183 = vector.broadcast %182 : vector<1x48xf32> to vector<48x48xf32>
    %184 = arith.mulf %180, %183 : vector<48x48xf32>
    %c0_94 = arith.constant 0 : index
    %c0_95 = arith.constant 0 : index
    %185 = vector.load %arg14[%c0_94, %c0_95] : memref<32x128xf32, #tpu.memory_space<vmem>>, vector<32x128xf32>
    %186 = arith.truncf %185 : vector<32x128xf32> to vector<32x128xbf16>
    %cst_96 = arith.constant dense<0.000000e+00> : vector<48x128xf32>
    %187 = tpu.matmul %3, %186, %cst_96 {dimension_numbers = #tpu.dot_dimension_numbers<[1], [0], [0], [1], [0, 0, 1, 1], [], []>} : vector<48x32xbf16>, vector<32x128xbf16>, vector<48x128xf32> -> vector<48x128xf32>
    %188 = arith.truncf %184 : vector<48x48xf32> to vector<48x48xbf16>
    %189 = arith.truncf %187 : vector<48x128xf32> to vector<48x128xbf16>
    %cst_97 = arith.constant dense<0.000000e+00> : vector<48x128xf32>
    %190 = tpu.matmul %188, %189, %cst_97 {dimension_numbers = #tpu.dot_dimension_numbers<[1], [0], [0], [1], [0, 0, 1, 1], [], []>} : vector<48x48xbf16>, vector<48x128xbf16>, vector<48x128xf32> -> vector<48x128xf32>
    %cst_98 = arith.constant 0.000000e+00 : f32
    %191 = vector.broadcast %cst_98 : f32 to vector<48x128xf32>
    %192 = arith.maximumf %190, %191 : vector<48x128xf32>
    %cst_99 = arith.constant 6.000000e-01 : f32
    %193 = vector.broadcast %cst_99 : f32 to vector<48x128xf32>
    %194 = arith.mulf %193, %176 : vector<48x128xf32>
    %cst_100 = arith.constant 4.000000e-01 : f32
    %195 = vector.broadcast %cst_100 : f32 to vector<48x128xf32>
    %196 = arith.mulf %195, %192 : vector<48x128xf32>
    %197 = arith.addf %194, %196 : vector<48x128xf32>
    %c0_101 = arith.constant 0 : index
    %c0_102 = arith.constant 0 : index
    %c0_103 = arith.constant 0 : index
    %198 = vector.load %arg15[%c0_101, %c0_102, %c0_103] : memref<1x48x128xf32, #tpu.memory_space<vmem>>, vector<1x48x128xf32>
    %199 = vector.shape_cast %198 : vector<1x48x128xf32> to vector<48x128xf32>
    %200 = vector.shape_cast %197 : vector<48x128xf32> to vector<1x48x128xf32>
    tpu.vector_store %arg15[%c0_101, %c0_102, %c0_103], %200 {strides = array<i32>} : memref<1x48x128xf32, #tpu.memory_space<vmem>>, vector<1x48x128xf32>,
    return
  }
  func.func @transform_0(%arg0: i32) -> (i32, i32) {
    %c0_i32 = arith.constant 0 : i32
    %c0_i32_0 = arith.constant 0 : i32
    %c0_i32_1 = arith.constant 0 : i32
    return %c0_i32, %c0_i32_0 : i32, i32
  }
  func.func @transform_1(%arg0: i32) -> (i32, i32, i32) {
    %c0_i32 = arith.constant 0 : i32
    %c0_i32_0 = arith.constant 0 : i32
    %c0_i32_1 = arith.constant 0 : i32
    return %arg0, %c0_i32, %c0_i32_0 : i32, i32, i32
  }
  func.func @transform_2(%arg0: i32) -> (i32, i32, i32) {
    %c0_i32 = arith.constant 0 : i32
    %c0_i32_0 = arith.constant 0 : i32
    %c0_i32_1 = arith.constant 0 : i32
    return %arg0, %c0_i32, %c0_i32_0 : i32, i32, i32
  }
  func.func @transform_3(%arg0: i32) -> (i32, i32, i32) {
    %c0_i32 = arith.constant 0 : i32
    %c0_i32_0 = arith.constant 0 : i32
    %c0_i32_1 = arith.constant 0 : i32
    return %arg0, %c0_i32, %c0_i32_0 : i32, i32, i32
  }
  func.func @transform_4(%arg0: i32) -> (i32, i32) {
    %c0_i32 = arith.constant 0 : i32
    %c0_i32_0 = arith.constant 0 : i32
    %c0_i32_1 = arith.constant 0 : i32
    return %c0_i32, %c0_i32_0 : i32, i32
  }
  func.func @transform_5(%arg0: i32) -> (i32, i32) {
    %c0_i32 = arith.constant 0 : i32
    %c0_i32_0 = arith.constant 0 : i32
    %c0_i32_1 = arith.constant 0 : i32
    return %c0_i32, %c0_i32_0 : i32, i32
  }
  func.func @transform_6(%arg0: i32) -> (i32, i32) {
    %c0_i32 = arith.constant 0 : i32
    %c0_i32_0 = arith.constant 0 : i32
    %c0_i32_1 = arith.constant 0 : i32
    return %c0_i32, %c0_i32_0 : i32, i32
  }
  func.func @transform_7(%arg0: i32) -> (i32, i32, i32) {
    %c0_i32 = arith.constant 0 : i32
    %c0_i32_0 = arith.constant 0 : i32
    %c0_i32_1 = arith.constant 0 : i32
    %c0_i32_2 = arith.constant 0 : i32
    return %c0_i32, %c0_i32_0, %c0_i32_1 : i32, i32, i32
  }
  func.func @transform_8(%arg0: i32) -> (i32, i32, i32) {
    %c0_i32 = arith.constant 0 : i32
    %c0_i32_0 = arith.constant 0 : i32
    %c0_i32_1 = arith.constant 0 : i32
    %c0_i32_2 = arith.constant 0 : i32
    return %c0_i32, %c0_i32_0, %c0_i32_1 : i32, i32, i32
  }
  func.func @transform_9(%arg0: i32) -> (i32, i32, i32) {
    %c0_i32 = arith.constant 0 : i32
    %c0_i32_0 = arith.constant 0 : i32
    %c0_i32_1 = arith.constant 0 : i32
    %c0_i32_2 = arith.constant 0 : i32
    return %c0_i32, %c0_i32_0, %c0_i32_1 : i32, i32, i32
  }
  func.func @transform_10(%arg0: i32) -> (i32, i32, i32) {
    %c0_i32 = arith.constant 0 : i32
    %c0_i32_0 = arith.constant 0 : i32
    %c0_i32_1 = arith.constant 0 : i32
    %c0_i32_2 = arith.constant 0 : i32
    return %c0_i32, %c0_i32_0, %c0_i32_1 : i32, i32, i32
  }
  func.func @transform_11(%arg0: i32) -> (i32, i32) {
    %c0_i32 = arith.constant 0 : i32
    %c0_i32_0 = arith.constant 0 : i32
    %c0_i32_1 = arith.constant 0 : i32
    return %c0_i32, %c0_i32_0 : i32, i32
  }
  func.func @transform_12(%arg0: i32) -> (i32, i32) {
    %c0_i32 = arith.constant 0 : i32
    %c0_i32_0 = arith.constant 0 : i32
    %c0_i32_1 = arith.constant 0 : i32
    return %c0_i32, %c0_i32_0 : i32, i32
  }
  func.func @transform_13(%arg0: i32) -> (i32, i32) {
    %c0_i32 = arith.constant 0 : i32
    %c0_i32_0 = arith.constant 0 : i32
    %c0_i32_1 = arith.constant 0 : i32
    return %c0_i32, %c0_i32_0 : i32, i32
  }
  func.func @transform_14(%arg0: i32) -> (i32, i32, i32) {
    %c0_i32 = arith.constant 0 : i32
    %c0_i32_0 = arith.constant 0 : i32
    %c0_i32_1 = arith.constant 0 : i32
    return %arg0, %c0_i32, %c0_i32_0 : i32, i32, i32
  }
}

</mosaic_0001>

<llo_original>
// kernel: tpu_custom_call.1
$region0: #{tpu_custom_call.1}
  #allocation0 [shape = 'u32[]', space=smem, size = 0x4, offset = 0x4, fixed_abs, tag = 'smem constant byte address 0x4 - core index']
  #allocation1 [shape = 'u32[144,128]{1,0:T(1,128)}', space=vmem, size = 0x12000, scoped, tag = 'internal scratch']
  %s0 = inlined_call_operand.vmem [shape: f32[48,32], index: 0, kind: input, shape index: {}]
  %s1 = inlined_call_operand.vmem [shape: f32[1,48,48], index: 1, kind: input, shape index: {}]
  %s2 = inlined_call_operand.vmem [shape: f32[1,48,1], index: 2, kind: input, shape index: {}]
  %s3 = inlined_call_operand.vmem [shape: f32[1,1,48], index: 3, kind: input, shape index: {}]
  %s4 = inlined_call_operand.vmem [shape: f32[32,32], index: 4, kind: input, shape index: {}]
  %s5 = inlined_call_operand.vmem [shape: f32[32,1], index: 5, kind: input, shape index: {}]
  %s6 = inlined_call_operand.vmem [shape: f32[1,32], index: 6, kind: input, shape index: {}]
  %s7 = inlined_call_operand.vmem [shape: f32[2,32,128], index: 7, kind: input, shape index: {}]
  %s8 = inlined_call_operand.vmem [shape: f32[2,128,1], index: 8, kind: input, shape index: {}]
  %s9 = inlined_call_operand.vmem [shape: f32[2,1,128], index: 9, kind: input, shape index: {}]
  %s10 = inlined_call_operand.vmem [shape: f32[2,128,128], index: 10, kind: input, shape index: {}]
  %s11 = inlined_call_operand.vmem [shape: f32[128,1], index: 11, kind: input, shape index: {}]
  %s12 = inlined_call_operand.vmem [shape: f32[1,128], index: 12, kind: input, shape index: {}]
  %s13 = inlined_call_operand.vmem [shape: f32[32,128], index: 13, kind: input, shape index: {}]
  %s14 = inlined_call_operand.hbm [shape: f32[1,48,128], index: 14, kind: output, shape index: {}]
  %s15 = sld [smem:[#allocation0]]
  $region66: #{tpu_custom_call.1} parent=0
    _
  %s17 = ssub.s32 1, %s15
  %s18 = scalar_select 0, %s17, %s15
  $region1: #{tpu_custom_call.1} parent=0
    #allocation2 [shape = 'u8[24576]{0}', space=vmem, size = 0x6000, scoped, tag = 'output window, operand 0, single buffered']
    #allocation3 [shape = 's32[1]{0}', space=sflag, size = 0x4, scoped, tag = 'scoped memory for tpu_custom_call.1']
    %19 = vsyncpa [#allocation3], 0
    // Predicated region
    $region2: #{tpu_custom_call.1} parent=1 // pred_check
      _
    $region3: #{tpu_custom_call.1} parent=1 // pred_check_branch
      %21 = sbr.rel (0) target = $region5
    $region4: #{tpu_custom_call.1} parent=1 // pred_region
      _
    $region5: #{tpu_custom_call.1} parent=1 // pred_fallthru
      _
    // Predicated region
    $region6: #{tpu_custom_call.1} parent=1 // pred_check
      _
    $region7: #{tpu_custom_call.1} parent=1 // pred_check_branch
      %23 = sbr.rel (0) target = $region9
    $region8: #{tpu_custom_call.1} parent=1 // pred_region
      _
    $region9: #{tpu_custom_call.1} parent=1 // pred_fallthru
      _
    // Predicated region
    $region10: #{tpu_custom_call.1} parent=1 // pred_check
      _
    $region11: #{tpu_custom_call.1} parent=1 // pred_check_branch
      %25 = sbr.rel (0) target = $region13
    $region12: #{tpu_custom_call.1} parent=1 // pred_region
      _
    $region13: #{tpu_custom_call.1} parent=1 // pred_fallthru
      _
    // Predicated region
    $region14: #{tpu_custom_call.1} parent=1 // pred_check
      _
    $region15: #{tpu_custom_call.1} parent=1 // pred_check_branch
      %27 = sbr.rel (0) target = $region17
    $region16: #{tpu_custom_call.1} parent=1 // pred_region
      _
    $region17: #{tpu_custom_call.1} parent=1 // pred_fallthru
      _
    // Predicated region
    $region18: #{tpu_custom_call.1} parent=1 // pred_check
      _
    $region19: #{tpu_custom_call.1} parent=1 // pred_check_branch
      %29 = sbr.rel (0) target = $region21
    $region20: #{tpu_custom_call.1} parent=1 // pred_region
      _
    $region21: #{tpu_custom_call.1} parent=1 // pred_fallthru
      _
    // Predicated region
    $region22: #{tpu_custom_call.1} parent=1 // pred_check
      _
    $region23: #{tpu_custom_call.1} parent=1 // pred_check_branch
      %31 = sbr.rel (0) target = $region25
    $region24: #{tpu_custom_call.1} parent=1 // pred_region
      _
    $region25: #{tpu_custom_call.1} parent=1 // pred_fallthru
      _
    // Predicated region
    $region26: #{tpu_custom_call.1} parent=1 // pred_check
      _
    $region27: #{tpu_custom_call.1} parent=1 // pred_check_branch
      %33 = sbr.rel (0) target = $region29
    $region28: #{tpu_custom_call.1} parent=1 // pred_region
      _
    $region29: #{tpu_custom_call.1} parent=1 // pred_fallthru
      _
    // Predicated region
    $region30: #{tpu_custom_call.1} parent=1 // pred_check
      _
    $region31: #{tpu_custom_call.1} parent=1 // pred_check_branch
      %35 = sbr.rel (0) target = $region33
    $region32: #{tpu_custom_call.1} parent=1 // pred_region
      _
    $region33: #{tpu_custom_call.1} parent=1 // pred_fallthru
      _
    // Predicated region
    $region34: #{tpu_custom_call.1} parent=1 // pred_check
      _
    $region35: #{tpu_custom_call.1} parent=1 // pred_check_branch
      %37 = sbr.rel (0) target = $region37
    $region36: #{tpu_custom_call.1} parent=1 // pred_region
      _
    $region37: #{tpu_custom_call.1} parent=1 // pred_fallthru
      _
    // Predicated region
    $region38: #{tpu_custom_call.1} parent=1 // pred_check
      _
    $region39: #{tpu_custom_call.1} parent=1 // pred_check_branch
      %39 = sbr.rel (0) target = $region41
    $region40: #{tpu_custom_call.1} parent=1 // pred_region
      _
    $region41: #{tpu_custom_call.1} parent=1 // pred_fallthru
      _
    // Predicated region
    $region42: #{tpu_custom_call.1} parent=1 // pred_check
      _
    $region43: #{tpu_custom_call.1} parent=1 // pred_check_branch
      %41 = sbr.rel (0) target = $region45
    $region44: #{tpu_custom_call.1} parent=1 // pred_region
      _
    $region45: #{tpu_custom_call.1} parent=1 // pred_fallthru
      _
    // Predicated region
    $region46: #{tpu_custom_call.1} parent=1 // pred_check
      _
    $region47: #{tpu_custom_call.1} parent=1 // pred_check_branch
      %43 = sbr.rel (0) target = $region49
    $region48: #{tpu_custom_call.1} parent=1 // pred_region
      _
    $region49: #{tpu_custom_call.1} parent=1 // pred_fallthru
      _
    // Predicated region
    $region50: #{tpu_custom_call.1} parent=1 // pred_check
      _
    $region51: #{tpu_custom_call.1} parent=1 // pred_check_branch
      %45 = sbr.rel (0) target = $region53
    $region52: #{tpu_custom_call.1} parent=1 // pred_region
      _
    $region53: #{tpu_custom_call.1} parent=1 // pred_fallthru
      _
    // Predicated region
    $region54: #{tpu_custom_call.1} parent=1 // pred_check
      _
    $region55: #{tpu_custom_call.1} parent=1 // pred_check_branch
      %47 = sbr.rel (0) target = $region57
    $region56: #{tpu_custom_call.1} parent=1 // pred_region
      _
    $region57: #{tpu_custom_call.1} parent=1 // pred_fallthru
      _
    %v49 = vld [vmem:[%s0] sm:$0xff]
    %v50 = vld [vmem:[%s0 + $0x8] sm:$0xff]
    %v51 = vld [vmem:[%s0 + $0x10] sm:$0xff]
    %v52 = vld [vmem:[%s0 + $0x18] sm:$0xff]
    %v53 = vld [vmem:[%s0 + $0x20] sm:$0xff]
    %v54 = vld [vmem:[%s0 + $0x28] sm:$0xff]
    %v55 = vld [vmem:[%s1] sm:$0xff]
    %v56 = vld [vmem:[%s1 + $0x8] sm:$0xff]
    %v57 = vld [vmem:[%s1 + $0x10] sm:$0xff]
    %v58 = vld [vmem:[%s1 + $0x18] sm:$0xff]
    %v59 = vld [vmem:[%s1 + $0x20] sm:$0xff]
    %v60 = vld [vmem:[%s1 + $0x28] sm:$0xff]
    %v61 = vpack.c.bf16 %v50, %v49
    %v62 = vpack.c.bf16 %v52, %v51
    %v63 = vpack.c.bf16 %v54, %v53
    %v64 = vld [vmem:[%s4] sm:$0xff]
    %v65 = vld [vmem:[%s4 + $0x8] sm:$0xff]
    %v66 = vld [vmem:[%s4 + $0x10] sm:$0xff]
    %v67 = vld [vmem:[%s4 + $0x18] sm:$0xff]
    %v68 = vpack.c.bf16 %v65, %v64
    %v69 = vpack.c.bf16 %v67, %v66
    %vm70 = vcmask 261120
    %v72 = vsel %vm70, %v61, 0
    %v75 = vsel %vm70, %v62, 0
    %v78 = vsel %vm70, %v63, 0
    %80 = vmatprep.subr.bf16.mxu0 0
    %81 = vmatpush1.bf16.msra.mxu0 0
    %82 = vmatprep.subr.bf16.mxu0 0
    %83 = vmatpush1.bf16.msra.mxu0 0
    %84 = vmatprep.subr.bf16.mxu0 0
    %85 = vmatpush1.bf16.msra.mxu0 0
    %86 = vmatprep.subr.bf16.mxu0 0
    %87 = vmatpush1.bf16.msra.mxu0 0
    %88 = vmatprep.subr.bf16.mxu0 0
    %89 = vmatpush1.bf16.msra.mxu0 0
    %90 = vmatprep.subr.bf16.mxu0 0
    %91 = vmatpush1.bf16.msra.mxu0 0
    %92 = vmatprep.subr.bf16.mxu0 0
    %93 = vmatpush1.bf16.msra.mxu0 %v69
    %94 = vmatprep.subr.bf16.mxu0 0
    %95 = vmatpush1.bf16.msra.mxu0 %v68
    %96 = vmatprep.subr.bf16.mxu0 0
    %97 = vmatpush2.bf16.msra.mxu0 0
    %98 = vmatprep.subr.bf16.mxu0 0
    %99 = vmatpush2.bf16.msra.mxu0 0
    %100 = vmatprep.subr.bf16.mxu0 0
    %101 = vmatpush2.bf16.msra.mxu0 0
    %102 = vmatprep.subr.bf16.mxu0 0
    %103 = vmatpush2.bf16.msra.mxu0 0
    %104 = vmatprep.subr.bf16.mxu0 0
    %105 = vmatpush2.bf16.msra.mxu0 0
    %106 = vmatprep.subr.bf16.mxu0 0
    %107 = vmatpush2.bf16.msra.mxu0 0
    %108 = vmatprep.subr.bf16.mxu0 0
    %109 = vmatpush2.bf16.msra.mxu0 0
    %110 = vmatprep.subr.bf16.mxu0 0
    %111 = vmatpush2.bf16.msra.mxu0 0
    %112 = vmatprep.mubr.bf16.mxu0 0
    %113 = vmatmul.mubr.bf16.gmra.mxu0 %v72
    %v114 = vpop.f32.mrf.mxu0
    %v115 = vadd.f32 0.0, %v114
    %v116 = vpop.f32.mrf.mxu0
    %v117 = vpop.f32.mrf.mxu0
    %v118 = vadd.f32 0.0, %v117
    %v119 = vpop.f32.mrf.mxu0
    %120 = vmatprep.mubr.bf16.mxu0 0
    %121 = vmatmul.mubr.bf16.gmra.mxu0 %v75
    %v122 = vpop.f32.mrf.mxu0
    %v123 = vadd.f32 0.0, %v122
    %v124 = vpop.f32.mrf.mxu0
    %v125 = vpop.f32.mrf.mxu0
    %v126 = vadd.f32 0.0, %v125
    %v127 = vpop.f32.mrf.mxu0
    %128 = vmatprep.mubr.bf16.mxu0 0
    %129 = vmatmul.mubr.bf16.gmra.mxu0 %v78
    %v130 = vpop.f32.mrf.mxu0
    %v131 = vadd.f32 0.0, %v130
    %v132 = vpop.f32.mrf.mxu0
    %v133 = vpop.f32.mrf.mxu0
    %v134 = vadd.f32 0.0, %v133
    %v135 = vpop.f32.mrf.mxu0
    %136 = vdwg.mxu0
    %v137 = vld [vmem:[%s5] sm:$0xff]
    %v138 = vld [vmem:[%s5 + $0x8] sm:$0xff]
    %v139 = vld [vmem:[%s5 + $0x10] sm:$0xff]
    %v140 = vld [vmem:[%s5 + $0x18] sm:$0xff]
    %v141 = vld [vmem:[%s6] sm:$0x1]
    %v143 = vsel %vm70, %v115, 0
    %v146 = vsel %vm70, %v118, 0
    %v149 = vsel %vm70, %v123, 0
    %v152 = vsel %vm70, %v126, 0
    %v155 = vsel %vm70, %v131, 0
    %v158 = vsel %vm70, %v134, 0
    %160 = vmatprep.subr.mxu0 0.0
    %161 = vmatpush1.msra.mxu0 0.0
    %162 = vmatprep.subr.mxu0 0.0
    %163 = vmatpush1.msra.mxu0 0.0
    %164 = vmatprep.subr.mxu0 0.0
    %165 = vmatpush1.msra.mxu0 0.0
    %166 = vmatprep.subr.mxu0 0.0
    %167 = vmatpush1.msra.mxu0 0.0
    %168 = vmatprep.subr.mxu0 0.0
    %169 = vmatpush1.msra.mxu0 0.0
    %170 = vmatprep.subr.mxu0 0.0
    %171 = vmatpush1.msra.mxu0 0.0
    %172 = vmatprep.subr.mxu0 0.0
    %173 = vmatpush1.msra.mxu0 0.0
    %174 = vmatprep.subr.mxu0 0.0
    %175 = vmatpush1.msra.mxu0 0.0
    %176 = vmatprep.subr.mxu0 0.0
    %177 = vmatpush1.msra.mxu0 0.0
    %178 = vmatprep.subr.mxu0 0.0
    %179 = vmatpush1.msra.mxu0 0.0
    %180 = vmatprep.subr.mxu0 0.0
    %181 = vmatpush1.msra.mxu0 0.0
    %182 = vmatprep.subr.mxu0 0.0
    %183 = vmatpush1.msra.mxu0 0.0
    %184 = vmatprep.subr.mxu0 0.0
    %185 = vmatpush1.msra.mxu0 %v140
    %186 = vmatprep.subr.mxu0 0.0
    %187 = vmatpush1.msra.mxu0 %v139
    %188 = vmatprep.subr.mxu0 0.0
    %189 = vmatpush1.msra.mxu0 %v138
    %190 = vmatprep.subr.mxu0 0.0
    %191 = vmatpush1.msra.mxu0 %v137
    %192 = vmatprep.subr.mxu0 0.0
    %193 = vmatpush2.msra.mxu0 0.0
    %194 = vmatprep.subr.mxu0 0.0
    %195 = vmatpush2.msra.mxu0 0.0
    %196 = vmatprep.subr.mxu0 0.0
    %197 = vmatpush2.msra.mxu0 0.0
    %198 = vmatprep.subr.mxu0 0.0
    %199 = vmatpush2.msra.mxu0 0.0
    %200 = vmatprep.subr.mxu0 0.0
    %201 = vmatpush2.msra.mxu0 0.0
    %202 = vmatprep.subr.mxu0 0.0
    %203 = vmatpush2.msra.mxu0 0.0
    %204 = vmatprep.subr.mxu0 0.0
    %205 = vmatpush2.msra.mxu0 0.0
    %206 = vmatprep.subr.mxu0 0.0
    %207 = vmatpush2.msra.mxu0 0.0
    %208 = vmatprep.subr.mxu0 0.0
    %209 = vmatpush2.msra.mxu0 0.0
    %210 = vmatprep.subr.mxu0 0.0
    %211 = vmatpush2.msra.mxu0 0.0
    %212 = vmatprep.subr.mxu0 0.0
    %213 = vmatpush2.msra.mxu0 0.0
    %214 = vmatprep.subr.mxu0 0.0
    %215 = vmatpush2.msra.mxu0 0.0
    %216 = vmatprep.subr.mxu0 0.0
    %217 = vmatpush2.msra.mxu0 0.0
    %218 = vmatprep.subr.mxu0 0.0
    %219 = vmatpush2.msra.mxu0 0.0
    %220 = vmatprep.subr.mxu0 0.0
    %221 = vmatpush2.msra.mxu0 0.0
    %222 = vmatprep.subr.mxu0 0.0
    %223 = vmatpush2.msra.mxu0 0.0
    %224 = vmatprep.mubr.f32.mxu0 0.0
    %225 = vmatmul.mubr.f32.gmra.mxu0 %v143
    %v226 = vpop.f32.mrf.mxu0
    %v227 = vadd.f32 0.0, %v226
    %v228 = vpop.f32.mrf.mxu0
    %229 = vmatprep.mubr.f32.mxu0 0.0
    %230 = vmatmul.mubr.f32.gmra.mxu0 %v146
    %v231 = vpop.f32.mrf.mxu0
    %v232 = vadd.f32 0.0, %v231
    %v233 = vpop.f32.mrf.mxu0
    %234 = vmatprep.mubr.f32.mxu0 0.0
    %235 = vmatmul.mubr.f32.gmra.mxu0 %v149
    %v236 = vpop.f32.mrf.mxu0
    %v237 = vadd.f32 0.0, %v236
    %v238 = vpop.f32.mrf.mxu0
    %239 = vmatprep.mubr.f32.mxu0 0.0
    %240 = vmatmul.mubr.f32.gmra.mxu0 %v152
    %v241 = vpop.f32.mrf.mxu0
    %v242 = vadd.f32 0.0, %v241
    %v243 = vpop.f32.mrf.mxu0
    %244 = vmatprep.mubr.f32.mxu0 0.0
    %245 = vmatmul.mubr.f32.gmra.mxu0 %v155
    %v246 = vpop.f32.mrf.mxu0
    %v247 = vadd.f32 0.0, %v246
    %v248 = vpop.f32.mrf.mxu0
    %249 = vmatprep.mubr.f32.mxu0 0.0
    %250 = vmatmul.mubr.f32.gmra.mxu0 %v158
    %v251 = vpop.f32.mrf.mxu0
    %v252 = vadd.f32 0.0, %v251
    %v253 = vpop.f32.mrf.mxu0
    %254 = vdwg.mxu0
    %v256 = vsel %vm70, %v141, 0
    %258 = vmatprep.subr.mxu0 0.0
    %259 = vmatpush1.xpose.msra.mxu0 0.0
    %260 = vmatprep.subr.mxu0 0.0
    %261 = vmatpush1.xpose.msra.mxu0 0.0
    %262 = vmatprep.subr.mxu0 0.0
    %263 = vmatpush1.xpose.msra.mxu0 0.0
    %264 = vmatprep.subr.mxu0 0.0
    %265 = vmatpush1.xpose.msra.mxu0 0.0
    %266 = vmatprep.subr.mxu0 0.0
    %267 = vmatpush1.xpose.msra.mxu0 0.0
    %268 = vmatprep.subr.mxu0 0.0
    %269 = vmatpush1.xpose.msra.mxu0 0.0
    %270 = vmatprep.subr.mxu0 0.0
    %271 = vmatpush1.xpose.msra.mxu0 0.0
    %272 = vmatprep.subr.mxu0 0.0
    %273 = vmatpush1.xpose.msra.mxu0 0.0
    %274 = vmatprep.subr.mxu0 0.0
    %275 = vmatpush1.xpose.msra.mxu0 0.0
    %276 = vmatprep.subr.mxu0 0.0
    %277 = vmatpush1.xpose.msra.mxu0 0.0
    %278 = vmatprep.subr.mxu0 0.0
    %279 = vmatpush1.xpose.msra.mxu0 %v158
    %280 = vmatprep.subr.mxu0 0.0
    %281 = vmatpush1.xpose.msra.mxu0 %v155
    %282 = vmatprep.subr.mxu0 0.0
    %283 = vmatpush1.xpose.msra.mxu0 %v152
    %284 = vmatprep.subr.mxu0 0.0
    %285 = vmatpush1.xpose.msra.mxu0 %v149
    %286 = vmatprep.subr.mxu0 0.0
    %287 = vmatpush1.xpose.msra.mxu0 %v146
    %288 = vmatprep.subr.mxu0 0.0
    %289 = vmatpush1.xpose.msra.mxu0 %v143
    %290 = vmatprep.subr.mxu0 0.0
    %291 = vmatpush2.xpose.msra.mxu0 0.0
    %292 = vmatprep.subr.mxu0 0.0
    %293 = vmatpush2.xpose.msra.mxu0 0.0
    %294 = vmatprep.subr.mxu0 0.0
    %295 = vmatpush2.xpose.msra.mxu0 0.0
    %296 = vmatprep.subr.mxu0 0.0
    %297 = vmatpush2.xpose.msra.mxu0 0.0
    %298 = vmatprep.subr.mxu0 0.0
    %299 = vmatpush2.xpose.msra.mxu0 0.0
    %300 = vmatprep.subr.mxu0 0.0
    %301 = vmatpush2.xpose.msra.mxu0 0.0
    %302 = vmatprep.subr.mxu0 0.0
    %303 = vmatpush2.xpose.msra.mxu0 0.0
    %304 = vmatprep.subr.mxu0 0.0
    %305 = vmatpush2.xpose.msra.mxu0 0.0
    %306 = vmatprep.subr.mxu0 0.0
    %307 = vmatpush2.xpose.msra.mxu0 0.0
    %308 = vmatprep.subr.mxu0 0.0
    %309 = vmatpush2.xpose.msra.mxu0 0.0
    %310 = vmatprep.subr.mxu0 0.0
    %311 = vmatpush2.xpose.msra.mxu0 0.0
    %312 = vmatprep.subr.mxu0 0.0
    %313 = vmatpush2.xpose.msra.mxu0 0.0
    %314 = vmatprep.subr.mxu0 0.0
    %315 = vmatpush2.xpose.msra.mxu0 0.0
    %316 = vmatprep.subr.mxu0 0.0
    %317 = vmatpush2.xpose.msra.mxu0 0.0
    %318 = vmatprep.subr.mxu0 0.0
    %319 = vmatpush2.xpose.msra.mxu0 0.0
    %320 = vmatprep.subr.mxu0 0.0
    %321 = vmatpush2.xpose.msra.mxu0 0.0
    %322 = vmatprep.mubr.f32.mxu0 0.0
    %323 = vmatmul.mubr.f32.gmra.mxu0 %v256
    %v324 = vpop.f32.mrf.mxu0
    %v325 = vadd.f32 0.0, %v324
    %v326 = vpop.f32.mrf.mxu0
    %327 = vdwg.mxu0
    %329 = vset.pattern.permute.xlu0 0
    %330 = vperm.xlu0 %329, %v227
    %v331 = vpop.permute.xlu0 %330
    %334 = vset.pattern.permute.xlu0 0
    %335 = vperm.xlu0 %334, %v232
    %v336 = vpop.permute.xlu0 %335
    %339 = vset.pattern.permute.xlu0 0
    %340 = vperm.xlu0 %339, %v237
    %v341 = vpop.permute.xlu0 %340
    %344 = vset.pattern.permute.xlu0 0
    %345 = vperm.xlu0 %344, %v242
    %v346 = vpop.permute.xlu0 %345
    %349 = vset.pattern.permute.xlu0 0
    %350 = vperm.xlu0 %349, %v247
    %v351 = vpop.permute.xlu0 %350
    %354 = vset.pattern.permute.xlu0 0
    %355 = vperm.xlu0 %354, %v252
    %v356 = vpop.permute.xlu0 %355
    %v358 = vlaneseq
    %v359 = vshrl.u32 %v358, 7
    %v360 = vsub.s32 0, %v359
    %v361 = vrot.slane %v325, %v360
    %v362 = vadd.f32 %v331, %v361
    %v363 = vadd.f32 %v336, %v361
    %v364 = vadd.f32 %v341, %v361
    %v365 = vadd.f32 %v346, %v361
    %v366 = vadd.f32 %v351, %v361
    %v367 = vadd.f32 %v356, %v361
    %vm368 = vcmp.gt.f32.partialorder %v362, 0.0
    %vm369 = vcmp.gt.f32.partialorder %v363, 0.0
    %vm370 = vcmp.gt.f32.partialorder %v364, 0.0
    %vm371 = vcmp.gt.f32.partialorder %v365, 0.0
    %vm372 = vcmp.gt.f32.partialorder %v366, 0.0
    %vm373 = vcmp.gt.f32.partialorder %v367, 0.0
    %v374 = vmul.f32 %v362, 0.2
    %v375 = vmul.f32 %v363, 0.2
    %v376 = vmul.f32 %v364, 0.2
    %v377 = vmul.f32 %v365, 0.2
    %v378 = vmul.f32 %v366, 0.2
    %v379 = vmul.f32 %v367, 0.2
    %v380 = vsel %vm368, %v362, %v374
    %v381 = vsel %vm369, %v363, %v375
    %v382 = vsel %vm370, %v364, %v376
    %v383 = vsel %vm371, %v365, %v377
    %v384 = vsel %vm372, %v366, %v378
    %v385 = vsel %vm373, %v367, %v379
    %vm386 = vcmp.gt.f32.partialorder %v55, 0.0
    %vm387 = vcmp.gt.f32.partialorder %v56, 0.0
    %vm388 = vcmp.gt.f32.partialorder %v57, 0.0
    %vm389 = vcmp.gt.f32.partialorder %v58, 0.0
    %vm390 = vcmp.gt.f32.partialorder %v59, 0.0
    %vm391 = vcmp.gt.f32.partialorder %v60, 0.0
    %v392 = vsel %vm386, %v380, -9e+15
    %v393 = vsel %vm387, %v381, -9e+15
    %v394 = vsel %vm388, %v382, -9e+15
    %v395 = vsel %vm389, %v383, -9e+15
    %v396 = vsel %vm390, %v384, -9e+15
    %v397 = vsel %vm391, %v385, -9e+15
    %vm398 = vcmask 392192
    %v399 = vsel %vm398, %v392, -inf
    %400 = vmax.xlane.f32.xlu0 %v399
    %v401 = vpop.xlane.xlu0 %400
    %v402 = vsel %vm398, %v393, -inf
    %403 = vmax.xlane.f32.xlu0 %v402
    %v404 = vpop.xlane.xlu0 %403
    %v405 = vsel %vm398, %v394, -inf
    %406 = vmax.xlane.f32.xlu0 %v405
    %v407 = vpop.xlane.xlu0 %406
    %v408 = vsel %vm398, %v395, -inf
    %409 = vmax.xlane.f32.xlu0 %v408
    %v410 = vpop.xlane.xlu0 %409
    %v411 = vsel %vm398, %v396, -inf
    %412 = vmax.xlane.f32.xlu0 %v411
    %v413 = vpop.xlane.xlu0 %412
    %v414 = vsel %vm398, %v397, -inf
    %415 = vmax.xlane.f32.xlu0 %v414
    %v416 = vpop.xlane.xlu0 %415
    %v417 = vsub.f32 %v392, %v401
    %v418 = vsub.f32 %v393, %v404
    %v419 = vsub.f32 %v394, %v407
    %v420 = vsub.f32 %v395, %v410
    %v421 = vsub.f32 %v396, %v413
    %v422 = vsub.f32 %v397, %v416
    %v423 = vmul.f32 %v417, 1.442695
    %v424 = vpow.pop %v423
    %v425 = vmul.f32 %v418, 1.442695
    %v426 = vpow.pop %v425
    %v427 = vmul.f32 %v419, 1.442695
    %v428 = vpow.pop %v427
    %v429 = vmul.f32 %v420, 1.442695
    %v430 = vpow.pop %v429
    %v431 = vmul.f32 %v421, 1.442695
    %v432 = vpow.pop %v431
    %v433 = vmul.f32 %v422, 1.442695
    %v434 = vpow.pop %v433
    %v435 = vsel %vm398, %v424, 0.0
    %436 = vadd.xlane.f32.xlu0 %v435
    %v437 = vpop.xlane.xlu0 %436
    %v438 = vsel %vm398, %v426, 0.0
    %439 = vadd.xlane.f32.xlu0 %v438
    %v440 = vpop.xlane.xlu0 %439
    %v441 = vsel %vm398, %v428, 0.0
    %442 = vadd.xlane.f32.xlu0 %v441
    %v443 = vpop.xlane.xlu0 %442
    %v444 = vsel %vm398, %v430, 0.0
    %445 = vadd.xlane.f32.xlu0 %v444
    %v446 = vpop.xlane.xlu0 %445
    %v447 = vsel %vm398, %v432, 0.0
    %448 = vadd.xlane.f32.xlu0 %v447
    %v449 = vpop.xlane.xlu0 %448
    %v450 = vsel %vm398, %v434, 0.0
    %451 = vadd.xlane.f32.xlu0 %v450
    %v452 = vpop.xlane.xlu0 %451
    %v453 = vrcp.pop %v437
    %v454 = vrcp.pop %v440
    %v455 = vrcp.pop %v443
    %v456 = vrcp.pop %v446
    %v457 = vrcp.pop %v449
    %v458 = vrcp.pop %v452
    %v459 = vmul.f32 %v424, %v453
    %v460 = vmul.f32 %v426, %v454
    %v461 = vmul.f32 %v428, %v455
    %v462 = vmul.f32 %v430, %v456
    %v463 = vmul.f32 %v432, %v457
    %v464 = vmul.f32 %v434, %v458
    %v465 = vmul.f32 %v55, 0.5
    %v466 = vmul.f32 %v56, 0.5
    %v467 = vmul.f32 %v57, 0.5
    %v468 = vmul.f32 %v58, 0.5
    %v469 = vmul.f32 %v59, 0.5
    %v470 = vmul.f32 %v60, 0.5
    %v471 = vmul.f32 %v459, 0.5
    %v472 = vmul.f32 %v460, 0.5
    %v473 = vmul.f32 %v461, 0.5
    %v474 = vmul.f32 %v462, 0.5
    %v475 = vmul.f32 %v463, 0.5
    %v476 = vmul.f32 %v464, 0.5
    %v477 = vadd.f32 %v465, %v471
    %v478 = vadd.f32 %v466, %v472
    %v479 = vadd.f32 %v467, %v473
    %v480 = vadd.f32 %v468, %v474
    %v481 = vadd.f32 %v469, %v475
    %v482 = vadd.f32 %v470, %v476
    %v483 = vld [vmem:[%s7] sm:$0xff]
    %v484 = vld [vmem:[%s7 + $0x8] sm:$0xff]
    %v485 = vld [vmem:[%s7 + $0x10] sm:$0xff]
    %v486 = vld [vmem:[%s7 + $0x18] sm:$0xff]
    %v487 = vpack.c.bf16 %v484, %v483
    %v488 = vpack.c.bf16 %v486, %v485
    %489 = vmatprep.subr.bf16.mxu0 0
    %490 = vmatpush1.bf16.msra.mxu0 0
    %491 = vmatprep.subr.bf16.mxu0 0
    %492 = vmatpush1.bf16.msra.mxu0 0
    %493 = vmatprep.subr.bf16.mxu0 0
    %494 = vmatpush1.bf16.msra.mxu0 0
    %495 = vmatprep.subr.bf16.mxu0 0
    %496 = vmatpush1.bf16.msra.mxu0 0
    %497 = vmatprep.subr.bf16.mxu0 0
    %498 = vmatpush1.bf16.msra.mxu0 0
    %499 = vmatprep.subr.bf16.mxu0 0
    %500 = vmatpush1.bf16.msra.mxu0 0
    %501 = vmatprep.subr.bf16.mxu0 0
    %502 = vmatpush1.bf16.msra.mxu0 %v488
    %503 = vmatprep.subr.bf16.mxu0 0
    %504 = vmatpush1.bf16.msra.mxu0 %v487
    %505 = vmatprep.subr.bf16.mxu0 0
    %506 = vmatpush2.bf16.msra.mxu0 0
    %507 = vmatprep.subr.bf16.mxu0 0
    %508 = vmatpush2.bf16.msra.mxu0 0
    %509 = vmatprep.subr.bf16.mxu0 0
    %510 = vmatpush2.bf16.msra.mxu0 0
    %511 = vmatprep.subr.bf16.mxu0 0
    %512 = vmatpush2.bf16.msra.mxu0 0
    %513 = vmatprep.subr.bf16.mxu0 0
    %514 = vmatpush2.bf16.msra.mxu0 0
    %515 = vmatprep.subr.bf16.mxu0 0
    %516 = vmatpush2.bf16.msra.mxu0 0
    %517 = vmatprep.subr.bf16.mxu0 0
    %518 = vmatpush2.bf16.msra.mxu0 0
    %519 = vmatprep.subr.bf16.mxu0 0
    %520 = vmatpush2.bf16.msra.mxu0 0
    %521 = vmatprep.mubr.bf16.mxu0 0
    %522 = vmatmul.mubr.bf16.gmra.mxu0 %v72
    %v523 = vpop.f32.mrf.mxu0
    %v524 = vadd.f32 0.0, %v523
    %v525 = vpop.f32.mrf.mxu0
    %v526 = vpop.f32.mrf.mxu0
    %v527 = vadd.f32 0.0, %v526
    %v528 = vpop.f32.mrf.mxu0
    %529 = vmatprep.mubr.bf16.mxu0 0
    %530 = vmatmul.mubr.bf16.gmra.mxu0 %v75
    %v531 = vpop.f32.mrf.mxu0
    %v532 = vadd.f32 0.0, %v531
    %v533 = vpop.f32.mrf.mxu0
    %v534 = vpop.f32.mrf.mxu0
    %v535 = vadd.f32 0.0, %v534
    %v536 = vpop.f32.mrf.mxu0
    %537 = vmatprep.mubr.bf16.mxu0 0
    %538 = vmatmul.mubr.bf16.gmra.mxu0 %v78
    %v539 = vpop.f32.mrf.mxu0
    %v540 = vadd.f32 0.0, %v539
    %v541 = vpop.f32.mrf.mxu0
    %v542 = vpop.f32.mrf.mxu0
    %v543 = vadd.f32 0.0, %v542
    %v544 = vpop.f32.mrf.mxu0
    %545 = vdwg.mxu0
    %v546 = vld [vmem:[%s8] sm:$0xff]
    %v547 = vld [vmem:[%s8 + $0x8] sm:$0xff]
    %v548 = vld [vmem:[%s8 + $0x10] sm:$0xff]
    %v549 = vld [vmem:[%s8 + $0x18] sm:$0xff]
    %v550 = vld [vmem:[%s8 + $0x20] sm:$0xff]
    %v551 = vld [vmem:[%s8 + $0x28] sm:$0xff]
    %v552 = vld [vmem:[%s8 + $0x30] sm:$0xff]
    %v553 = vld [vmem:[%s8 + $0x38] sm:$0xff]
    %v554 = vld [vmem:[%s8 + $0x40] sm:$0xff]
    %v555 = vld [vmem:[%s8 + $0x48] sm:$0xff]
    %v556 = vld [vmem:[%s8 + $0x50] sm:$0xff]
    %v557 = vld [vmem:[%s8 + $0x58] sm:$0xff]
    %v558 = vld [vmem:[%s8 + $0x60] sm:$0xff]
    %v559 = vld [vmem:[%s8 + $0x68] sm:$0xff]
    %v560 = vld [vmem:[%s8 + $0x70] sm:$0xff]
    %v561 = vld [vmem:[%s8 + $0x78] sm:$0xff]
    %v562 = vld [vmem:[%s9] sm:$0x1]
    %563 = vmatprep.subr.mxu0 0.0
    %564 = vmatpush1.msra.mxu0 %v561
    %565 = vmatprep.subr.mxu0 0.0
    %566 = vmatpush1.msra.mxu0 %v560
    %567 = vmatprep.subr.mxu0 0.0
    %568 = vmatpush1.msra.mxu0 %v559
    %569 = vmatprep.subr.mxu0 0.0
    %570 = vmatpush1.msra.mxu0 %v558
    %571 = vmatprep.subr.mxu0 0.0
    %572 = vmatpush1.msra.mxu0 %v557
    %573 = vmatprep.subr.mxu0 0.0
    %574 = vmatpush1.msra.mxu0 %v556
    %575 = vmatprep.subr.mxu0 0.0
    %576 = vmatpush1.msra.mxu0 %v555
    %577 = vmatprep.subr.mxu0 0.0
    %578 = vmatpush1.msra.mxu0 %v554
    %579 = vmatprep.subr.mxu0 0.0
    %580 = vmatpush1.msra.mxu0 %v553
    %581 = vmatprep.subr.mxu0 0.0
    %582 = vmatpush1.msra.mxu0 %v552
    %583 = vmatprep.subr.mxu0 0.0
    %584 = vmatpush1.msra.mxu0 %v551
    %585 = vmatprep.subr.mxu0 0.0
    %586 = vmatpush1.msra.mxu0 %v550
    %587 = vmatprep.subr.mxu0 0.0
    %588 = vmatpush1.msra.mxu0 %v549
    %589 = vmatprep.subr.mxu0 0.0
    %590 = vmatpush1.msra.mxu0 %v548
    %591 = vmatprep.subr.mxu0 0.0
    %592 = vmatpush1.msra.mxu0 %v547
    %593 = vmatprep.subr.mxu0 0.0
    %594 = vmatpush1.msra.mxu0 %v546
    %595 = vmatprep.subr.mxu0 0.0
    %596 = vmatpush2.msra.mxu0 0.0
    %597 = vmatprep.subr.mxu0 0.0
    %598 = vmatpush2.msra.mxu0 0.0
    %599 = vmatprep.subr.mxu0 0.0
    %600 = vmatpush2.msra.mxu0 0.0
    %601 = vmatprep.subr.mxu0 0.0
    %602 = vmatpush2.msra.mxu0 0.0
    %603 = vmatprep.subr.mxu0 0.0
    %604 = vmatpush2.msra.mxu0 0.0
    %605 = vmatprep.subr.mxu0 0.0
    %606 = vmatpush2.msra.mxu0 0.0
    %607 = vmatprep.subr.mxu0 0.0
    %608 = vmatpush2.msra.mxu0 0.0
    %609 = vmatprep.subr.mxu0 0.0
    %610 = vmatpush2.msra.mxu0 0.0
    %611 = vmatprep.subr.mxu0 0.0
    %612 = vmatpush2.msra.mxu0 0.0
    %613 = vmatprep.subr.mxu0 0.0
    %614 = vmatpush2.msra.mxu0 0.0
    %615 = vmatprep.subr.mxu0 0.0
    %616 = vmatpush2.msra.mxu0 0.0
    %617 = vmatprep.subr.mxu0 0.0
    %618 = vmatpush2.msra.mxu0 0.0
    %619 = vmatprep.subr.mxu0 0.0
    %620 = vmatpush2.msra.mxu0 0.0
    %621 = vmatprep.subr.mxu0 0.0
    %622 = vmatpush2.msra.mxu0 0.0
    %623 = vmatprep.subr.mxu0 0.0
    %624 = vmatpush2.msra.mxu0 0.0
    %625 = vmatprep.subr.mxu0 0.0
    %626 = vmatpush2.msra.mxu0 0.0
    %627 = vmatprep.mubr.f32.mxu0 0.0
    %628 = vmatmul.mubr.f32.gmra.mxu0 %v524
    %v629 = vpop.f32.mrf.mxu0
    %v630 = vadd.f32 0.0, %v629
    %v631 = vpop.f32.mrf.mxu0
    %632 = vmatprep.mubr.f32.mxu0 0.0
    %633 = vmatmul.mubr.f32.gmra.mxu0 %v527
    %v634 = vpop.f32.mrf.mxu0
    %v635 = vadd.f32 0.0, %v634
    %v636 = vpop.f32.mrf.mxu0
    %637 = vmatprep.mubr.f32.mxu0 0.0
    %638 = vmatmul.mubr.f32.gmra.mxu0 %v532
    %v639 = vpop.f32.mrf.mxu0
    %v640 = vadd.f32 0.0, %v639
    %v641 = vpop.f32.mrf.mxu0
    %642 = vmatprep.mubr.f32.mxu0 0.0
    %643 = vmatmul.mubr.f32.gmra.mxu0 %v535
    %v644 = vpop.f32.mrf.mxu0
    %v645 = vadd.f32 0.0, %v644
    %v646 = vpop.f32.mrf.mxu0
    %647 = vmatprep.mubr.f32.mxu0 0.0
    %648 = vmatmul.mubr.f32.gmra.mxu0 %v540
    %v649 = vpop.f32.mrf.mxu0
    %v650 = vadd.f32 0.0, %v649
    %v651 = vpop.f32.mrf.mxu0
    %652 = vmatprep.mubr.f32.mxu0 0.0
    %653 = vmatmul.mubr.f32.gmra.mxu0 %v543
    %v654 = vpop.f32.mrf.mxu0
    %v655 = vadd.f32 0.0, %v654
    %v656 = vpop.f32.mrf.mxu0
    %657 = vdwg.mxu0
    %658 = vmatprep.subr.mxu0 0.0
    %659 = vmatpush1.xpose.msra.mxu0 0.0
    %660 = vmatprep.subr.mxu0 0.0
    %661 = vmatpush1.xpose.msra.mxu0 0.0
    %662 = vmatprep.subr.mxu0 0.0
    %663 = vmatpush1.xpose.msra.mxu0 0.0
    %664 = vmatprep.subr.mxu0 0.0
    %665 = vmatpush1.xpose.msra.mxu0 0.0
    %666 = vmatprep.subr.mxu0 0.0
    %667 = vmatpush1.xpose.msra.mxu0 0.0
    %668 = vmatprep.subr.mxu0 0.0
    %669 = vmatpush1.xpose.msra.mxu0 0.0
    %670 = vmatprep.subr.mxu0 0.0
    %671 = vmatpush1.xpose.msra.mxu0 0.0
    %672 = vmatprep.subr.mxu0 0.0
    %673 = vmatpush1.xpose.msra.mxu0 0.0
    %674 = vmatprep.subr.mxu0 0.0
    %675 = vmatpush1.xpose.msra.mxu0 0.0
    %676 = vmatprep.subr.mxu0 0.0
    %677 = vmatpush1.xpose.msra.mxu0 0.0
    %678 = vmatprep.subr.mxu0 0.0
    %679 = vmatpush1.xpose.msra.mxu0 %v543
    %680 = vmatprep.subr.mxu0 0.0
    %681 = vmatpush1.xpose.msra.mxu0 %v540
    %682 = vmatprep.subr.mxu0 0.0
    %683 = vmatpush1.xpose.msra.mxu0 %v535
    %684 = vmatprep.subr.mxu0 0.0
    %685 = vmatpush1.xpose.msra.mxu0 %v532
    %686 = vmatprep.subr.mxu0 0.0
    %687 = vmatpush1.xpose.msra.mxu0 %v527
    %688 = vmatprep.subr.mxu0 0.0
    %689 = vmatpush1.xpose.msra.mxu0 %v524
    %690 = vmatprep.subr.mxu0 0.0
    %691 = vmatpush2.xpose.msra.mxu0 0.0
    %692 = vmatprep.subr.mxu0 0.0
    %693 = vmatpush2.xpose.msra.mxu0 0.0
    %694 = vmatprep.subr.mxu0 0.0
    %695 = vmatpush2.xpose.msra.mxu0 0.0
    %696 = vmatprep.subr.mxu0 0.0
    %697 = vmatpush2.xpose.msra.mxu0 0.0
    %698 = vmatprep.subr.mxu0 0.0
    %699 = vmatpush2.xpose.msra.mxu0 0.0
    %700 = vmatprep.subr.mxu0 0.0
    %701 = vmatpush2.xpose.msra.mxu0 0.0
    %702 = vmatprep.subr.mxu0 0.0
    %703 = vmatpush2.xpose.msra.mxu0 0.0
    %704 = vmatprep.subr.mxu0 0.0
    %705 = vmatpush2.xpose.msra.mxu0 0.0
    %706 = vmatprep.subr.mxu0 0.0
    %707 = vmatpush2.xpose.msra.mxu0 0.0
    %708 = vmatprep.subr.mxu0 0.0
    %709 = vmatpush2.xpose.msra.mxu0 0.0
    %710 = vmatprep.subr.mxu0 0.0
    %711 = vmatpush2.xpose.msra.mxu0 0.0
    %712 = vmatprep.subr.mxu0 0.0
    %713 = vmatpush2.xpose.msra.mxu0 0.0
    %714 = vmatprep.subr.mxu0 0.0
    %715 = vmatpush2.xpose.msra.mxu0 0.0
    %716 = vmatprep.subr.mxu0 0.0
    %717 = vmatpush2.xpose.msra.mxu0 0.0
    %718 = vmatprep.subr.mxu0 0.0
    %719 = vmatpush2.xpose.msra.mxu0 0.0
    %720 = vmatprep.subr.mxu0 0.0
    %721 = vmatpush2.xpose.msra.mxu0 0.0
    %722 = vmatprep.mubr.f32.mxu0 0.0
    %723 = vmatmul.mubr.f32.gmra.mxu0 %v562
    %v724 = vpop.f32.mrf.mxu0
    %v725 = vadd.f32 0.0, %v724
    %v726 = vpop.f32.mrf.mxu0
    %727 = vdwg.mxu0
    %729 = vset.pattern.permute.xlu0 0
    %730 = vperm.xlu0 %729, %v630
    %v731 = vpop.permute.xlu0 %730
    %734 = vset.pattern.permute.xlu0 0
    %735 = vperm.xlu0 %734, %v635
    %v736 = vpop.permute.xlu0 %735
    %739 = vset.pattern.permute.xlu0 0
    %740 = vperm.xlu0 %739, %v640
    %v741 = vpop.permute.xlu0 %740
    %744 = vset.pattern.permute.xlu0 0
    %745 = vperm.xlu0 %744, %v645
    %v746 = vpop.permute.xlu0 %745
    %749 = vset.pattern.permute.xlu0 0
    %750 = vperm.xlu0 %749, %v650
    %v751 = vpop.permute.xlu0 %750
    %754 = vset.pattern.permute.xlu0 0
    %755 = vperm.xlu0 %754, %v655
    %v756 = vpop.permute.xlu0 %755
    %v758 = vlaneseq
    %v759 = vshrl.u32 %v758, 7
    %v760 = vsub.s32 0, %v759
    %v761 = vrot.slane %v725, %v760
    %v762 = vadd.f32 %v731, %v761
    %v763 = vadd.f32 %v736, %v761
    %v764 = vadd.f32 %v741, %v761
    %v765 = vadd.f32 %v746, %v761
    %v766 = vadd.f32 %v751, %v761
    %v767 = vadd.f32 %v756, %v761
    %vm768 = vcmp.gt.f32.partialorder %v762, 0.0
    %vm769 = vcmp.gt.f32.partialorder %v763, 0.0
    %vm770 = vcmp.gt.f32.partialorder %v764, 0.0
    %vm771 = vcmp.gt.f32.partialorder %v765, 0.0
    %vm772 = vcmp.gt.f32.partialorder %v766, 0.0
    %vm773 = vcmp.gt.f32.partialorder %v767, 0.0
    %v774 = vmul.f32 %v762, 0.2
    %v775 = vmul.f32 %v763, 0.2
    %v776 = vmul.f32 %v764, 0.2
    %v777 = vmul.f32 %v765, 0.2
    %v778 = vmul.f32 %v766, 0.2
    %v779 = vmul.f32 %v767, 0.2
    %v780 = vsel %vm768, %v762, %v774
    %v781 = vsel %vm769, %v763, %v775
    %v782 = vsel %vm770, %v764, %v776
    %v783 = vsel %vm771, %v765, %v777
    %v784 = vsel %vm772, %v766, %v778
    %v785 = vsel %vm773, %v767, %v779
    %v786 = vsel %vm386, %v780, -9e+15
    %v787 = vsel %vm387, %v781, -9e+15
    %v788 = vsel %vm388, %v782, -9e+15
    %v789 = vsel %vm389, %v783, -9e+15
    %v790 = vsel %vm390, %v784, -9e+15
    %v791 = vsel %vm391, %v785, -9e+15
    %v792 = vsel %vm398, %v786, -inf
    %793 = vmax.xlane.f32.xlu0 %v792
    %v794 = vpop.xlane.xlu0 %793
    %v795 = vsel %vm398, %v787, -inf
    %796 = vmax.xlane.f32.xlu0 %v795
    %v797 = vpop.xlane.xlu0 %796
    %v798 = vsel %vm398, %v788, -inf
    %799 = vmax.xlane.f32.xlu0 %v798
    %v800 = vpop.xlane.xlu0 %799
    %v801 = vsel %vm398, %v789, -inf
    %802 = vmax.xlane.f32.xlu0 %v801
    %v803 = vpop.xlane.xlu0 %802
    %v804 = vsel %vm398, %v790, -inf
    %805 = vmax.xlane.f32.xlu0 %v804
    %v806 = vpop.xlane.xlu0 %805
    %v807 = vsel %vm398, %v791, -inf
    %808 = vmax.xlane.f32.xlu0 %v807
    %v809 = vpop.xlane.xlu0 %808
    %v810 = vsub.f32 %v786, %v794
    %v811 = vsub.f32 %v787, %v797
    %v812 = vsub.f32 %v788, %v800
    %v813 = vsub.f32 %v789, %v803
    %v814 = vsub.f32 %v790, %v806
    %v815 = vsub.f32 %v791, %v809
    %v816 = vmul.f32 %v810, 1.442695
    %v817 = vpow.pop %v816
    %v818 = vmul.f32 %v811, 1.442695
    %v819 = vpow.pop %v818
    %v820 = vmul.f32 %v812, 1.442695
    %v821 = vpow.pop %v820
    %v822 = vmul.f32 %v813, 1.442695
    %v823 = vpow.pop %v822
    %v824 = vmul.f32 %v814, 1.442695
    %v825 = vpow.pop %v824
    %v826 = vmul.f32 %v815, 1.442695
    %v827 = vpow.pop %v826
    %v828 = vsel %vm398, %v817, 0.0
    %829 = vadd.xlane.f32.xlu0 %v828
    %v830 = vpop.xlane.xlu0 %829
    %v831 = vsel %vm398, %v819, 0.0
    %832 = vadd.xlane.f32.xlu0 %v831
    %v833 = vpop.xlane.xlu0 %832
    %v834 = vsel %vm398, %v821, 0.0
    %835 = vadd.xlane.f32.xlu0 %v834
    %v836 = vpop.xlane.xlu0 %835
    %v837 = vsel %vm398, %v823, 0.0
    %838 = vadd.xlane.f32.xlu0 %v837
    %v839 = vpop.xlane.xlu0 %838
    %v840 = vsel %vm398, %v825, 0.0
    %841 = vadd.xlane.f32.xlu0 %v840
    %v842 = vpop.xlane.xlu0 %841
    %v843 = vsel %vm398, %v827, 0.0
    %844 = vadd.xlane.f32.xlu0 %v843
    %v845 = vpop.xlane.xlu0 %844
    %v846 = vrcp.pop %v830
    %v847 = vrcp.pop %v833
    %v848 = vrcp.pop %v836
    %v849 = vrcp.pop %v839
    %v850 = vrcp.pop %v842
    %v851 = vrcp.pop %v845
    %v852 = vmul.f32 %v817, %v846
    %v853 = vmul.f32 %v819, %v847
    %v854 = vmul.f32 %v821, %v848
    %v855 = vmul.f32 %v823, %v849
    %v856 = vmul.f32 %v825, %v850
    %v857 = vmul.f32 %v827, %v851
    %v858 = vmul.f32 %v852, %v477
    %v859 = vmul.f32 %v853, %v478
    %v860 = vmul.f32 %v854, %v479
    %v861 = vmul.f32 %v855, %v480
    %v862 = vmul.f32 %v856, %v481
    %v863 = vmul.f32 %v857, %v482
    %v864 = vpack.c.bf16 %v859, %v858
    %v865 = vpack.c.bf16 %v861, %v860
    %v866 = vpack.c.bf16 %v863, %v862
    %v867 = vpack.c.bf16 %v527, %v524
    %v868 = vpack.c.bf16 %v535, %v532
    %v869 = vpack.c.bf16 %v543, %v540
    %v871 = vsel %vm398, %v864, 0
    %v874 = vsel %vm398, %v865, 0
    %v877 = vsel %vm398, %v866, 0
    %879 = vmatprep.subr.bf16.mxu0 0
    %880 = vmatpush1.bf16.msra.mxu0 0
    %881 = vmatprep.subr.bf16.mxu0 0
    %882 = vmatpush1.bf16.msra.mxu0 0
    %883 = vmatprep.subr.bf16.mxu0 0
    %884 = vmatpush1.bf16.msra.mxu0 0
    %885 = vmatprep.subr.bf16.mxu0 0
    %886 = vmatpush1.bf16.msra.mxu0 0
    %887 = vmatprep.subr.bf16.mxu0 0
    %888 = vmatpush1.bf16.msra.mxu0 0
    %889 = vmatprep.subr.bf16.mxu0 0
    %890 = vmatpush1.bf16.msra.mxu0 %v869
    %891 = vmatprep.subr.bf16.mxu0 0
    %892 = vmatpush1.bf16.msra.mxu0 %v868
    %893 = vmatprep.subr.bf16.mxu0 0
    %894 = vmatpush1.bf16.msra.mxu0 %v867
    %895 = vmatprep.subr.bf16.mxu0 0
    %896 = vmatpush2.bf16.msra.mxu0 0
    %897 = vmatprep.subr.bf16.mxu0 0
    %898 = vmatpush2.bf16.msra.mxu0 0
    %899 = vmatprep.subr.bf16.mxu0 0
    %900 = vmatpush2.bf16.msra.mxu0 0
    %901 = vmatprep.subr.bf16.mxu0 0
    %902 = vmatpush2.bf16.msra.mxu0 0
    %903 = vmatprep.subr.bf16.mxu0 0
    %904 = vmatpush2.bf16.msra.mxu0 0
    %905 = vmatprep.subr.bf16.mxu0 0
    %906 = vmatpush2.bf16.msra.mxu0 0
    %907 = vmatprep.subr.bf16.mxu0 0
    %908 = vmatpush2.bf16.msra.mxu0 0
    %909 = vmatprep.subr.bf16.mxu0 0
    %910 = vmatpush2.bf16.msra.mxu0 0
    %911 = vmatprep.mubr.bf16.mxu0 0
    %912 = vmatmul.mubr.bf16.gmra.mxu0 %v871
    %v913 = vpop.f32.mrf.mxu0
    %v914 = vadd.f32 0.0, %v913
    %v915 = vpop.f32.mrf.mxu0
    %v916 = vpop.f32.mrf.mxu0
    %v917 = vadd.f32 0.0, %v916
    %v918 = vpop.f32.mrf.mxu0
    %919 = vmatprep.mubr.bf16.mxu0 0
    %920 = vmatmul.mubr.bf16.gmra.mxu0 %v874
    %v921 = vpop.f32.mrf.mxu0
    %v922 = vadd.f32 0.0, %v921
    %v923 = vpop.f32.mrf.mxu0
    %v924 = vpop.f32.mrf.mxu0
    %v925 = vadd.f32 0.0, %v924
    %v926 = vpop.f32.mrf.mxu0
    %927 = vmatprep.mubr.bf16.mxu0 0
    %928 = vmatmul.mubr.bf16.gmra.mxu0 %v877
    %v929 = vpop.f32.mrf.mxu0
    %v930 = vadd.f32 0.0, %v929
    %v931 = vpop.f32.mrf.mxu0
    %v932 = vpop.f32.mrf.mxu0
    %v933 = vadd.f32 0.0, %v932
    %v934 = vpop.f32.mrf.mxu0
    %935 = vdwg.mxu0
    %vm936 = vcmp.gt.f32.partialorder %v914, 0.0
    %vm937 = vcmp.gt.f32.partialorder %v917, 0.0
    %vm938 = vcmp.gt.f32.partialorder %v922, 0.0
    %vm939 = vcmp.gt.f32.partialorder %v925, 0.0
    %vm940 = vcmp.gt.f32.partialorder %v930, 0.0
    %vm941 = vcmp.gt.f32.partialorder %v933, 0.0
    %v942 = vmin.f32 %v914, 0.0
    %v943 = vmin.f32 %v917, 0.0
    %v944 = vmin.f32 %v922, 0.0
    %v945 = vmin.f32 %v925, 0.0
    %v946 = vmin.f32 %v930, 0.0
    %v947 = vmin.f32 %v933, 0.0
    %v948 = vmul.f32 %v942, 1.442695
    %v949 = vpow.pop %v948
    %v950 = vmul.f32 %v943, 1.442695
    %v951 = vpow.pop %v950
    %v952 = vmul.f32 %v944, 1.442695
    %v953 = vpow.pop %v952
    %v954 = vmul.f32 %v945, 1.442695
    %v955 = vpow.pop %v954
    %v956 = vmul.f32 %v946, 1.442695
    %v957 = vpow.pop %v956
    %v958 = vmul.f32 %v947, 1.442695
    %v959 = vpow.pop %v958
    %v960 = vsub.f32 %v949, 1.0
    %v961 = vsub.f32 %v951, 1.0
    %v962 = vsub.f32 %v953, 1.0
    %v963 = vsub.f32 %v955, 1.0
    %v964 = vsub.f32 %v957, 1.0
    %v965 = vsub.f32 %v959, 1.0
    %v966 = vsel %vm936, %v914, %v960
    %v967 = vsel %vm937, %v917, %v961
    %v968 = vsel %vm938, %v922, %v962
    %v969 = vsel %vm939, %v925, %v963
    %v970 = vsel %vm940, %v930, %v964
    %v971 = vsel %vm941, %v933, %v965
    %v972 = vpack.c.bf16 %v967, %v966
    %v973 = vpack.c.bf16 %v969, %v968
    %v974 = vpack.c.bf16 %v971, %v970
    %v975 = vld [vmem:[%s10] sm:$0xff]
    %v976 = vld [vmem:[%s10 + $0x8] sm:$0xff]
    %v977 = vld [vmem:[%s10 + $0x10] sm:$0xff]
    %v978 = vld [vmem:[%s10 + $0x18] sm:$0xff]
    %v979 = vld [vmem:[%s10 + $0x20] sm:$0xff]
    %v980 = vld [vmem:[%s10 + $0x28] sm:$0xff]
    %v981 = vld [vmem:[%s10 + $0x30] sm:$0xff]
    %v982 = vld [vmem:[%s10 + $0x38] sm:$0xff]
    %v983 = vld [vmem:[%s10 + $0x40] sm:$0xff]
    %v984 = vld [vmem:[%s10 + $0x48] sm:$0xff]
    %v985 = vld [vmem:[%s10 + $0x50] sm:$0xff]
    %v986 = vld [vmem:[%s10 + $0x58] sm:$0xff]
    %v987 = vld [vmem:[%s10 + $0x60] sm:$0xff]
    %v988 = vld [vmem:[%s10 + $0x68] sm:$0xff]
    %v989 = vld [vmem:[%s10 + $0x70] sm:$0xff]
    %v990 = vld [vmem:[%s10 + $0x78] sm:$0xff]
    %v991 = vpack.c.bf16 %v976, %v975
    %v992 = vpack.c.bf16 %v978, %v977
    %v993 = vpack.c.bf16 %v980, %v979
    %v994 = vpack.c.bf16 %v982, %v981
    %v995 = vpack.c.bf16 %v984, %v983
    %v996 = vpack.c.bf16 %v986, %v985
    %v997 = vpack.c.bf16 %v988, %v987
    %v998 = vpack.c.bf16 %v990, %v989
    %s999 = scalar_lea.vmem %s7, 32
    %v1000 = vld [vmem:[%s999] sm:$0xff]
    %v1001 = vld [vmem:[%s999 + $0x8] sm:$0xff]
    %v1002 = vld [vmem:[%s999 + $0x10] sm:$0xff]
    %v1003 = vld [vmem:[%s999 + $0x18] sm:$0xff]
    %v1004 = vpack.c.bf16 %v1001, %v1000
    %v1005 = vpack.c.bf16 %v1003, %v1002
    %1006 = vmatprep.subr.bf16.mxu0 0
    %1007 = vmatpush1.bf16.msra.mxu0 0
    %1008 = vmatprep.subr.bf16.mxu0 0
    %1009 = vmatpush1.bf16.msra.mxu0 0
    %1010 = vmatprep.subr.bf16.mxu0 0
    %1011 = vmatpush1.bf16.msra.mxu0 0
    %1012 = vmatprep.subr.bf16.mxu0 0
    %1013 = vmatpush1.bf16.msra.mxu0 0
    %1014 = vmatprep.subr.bf16.mxu0 0
    %1015 = vmatpush1.bf16.msra.mxu0 0
    %1016 = vmatprep.subr.bf16.mxu0 0
    %1017 = vmatpush1.bf16.msra.mxu0 0
    %1018 = vmatprep.subr.bf16.mxu0 0
    %1019 = vmatpush1.bf16.msra.mxu0 %v1005
    %1020 = vmatprep.subr.bf16.mxu0 0
    %1021 = vmatpush1.bf16.msra.mxu0 %v1004
    %1022 = vmatprep.subr.bf16.mxu0 0
    %1023 = vmatpush2.bf16.msra.mxu0 0
    %1024 = vmatprep.subr.bf16.mxu0 0
    %1025 = vmatpush2.bf16.msra.mxu0 0
    %1026 = vmatprep.subr.bf16.mxu0 0
    %1027 = vmatpush2.bf16.msra.mxu0 0
    %1028 = vmatprep.subr.bf16.mxu0 0
    %1029 = vmatpush2.bf16.msra.mxu0 0
    %1030 = vmatprep.subr.bf16.mxu0 0
    %1031 = vmatpush2.bf16.msra.mxu0 0
    %1032 = vmatprep.subr.bf16.mxu0 0
    %1033 = vmatpush2.bf16.msra.mxu0 0
    %1034 = vmatprep.subr.bf16.mxu0 0
    %1035 = vmatpush2.bf16.msra.mxu0 0
    %1036 = vmatprep.subr.bf16.mxu0 0
    %1037 = vmatpush2.bf16.msra.mxu0 0
    %1038 = vmatprep.mubr.bf16.mxu0 0
    %1039 = vmatmul.mubr.bf16.gmra.mxu0 %v72
    %v1040 = vpop.f32.mrf.mxu0
    %v1041 = vadd.f32 0.0, %v1040
    %v1042 = vpop.f32.mrf.mxu0
    %v1043 = vpop.f32.mrf.mxu0
    %v1044 = vadd.f32 0.0, %v1043
    %v1045 = vpop.f32.mrf.mxu0
    %1046 = vmatprep.mubr.bf16.mxu0 0
    %1047 = vmatmul.mubr.bf16.gmra.mxu0 %v75
    %v1048 = vpop.f32.mrf.mxu0
    %v1049 = vadd.f32 0.0, %v1048
    %v1050 = vpop.f32.mrf.mxu0
    %v1051 = vpop.f32.mrf.mxu0
    %v1052 = vadd.f32 0.0, %v1051
    %v1053 = vpop.f32.mrf.mxu0
    %1054 = vmatprep.mubr.bf16.mxu0 0
    %1055 = vmatmul.mubr.bf16.gmra.mxu0 %v78
    %v1056 = vpop.f32.mrf.mxu0
    %v1057 = vadd.f32 0.0, %v1056
    %v1058 = vpop.f32.mrf.mxu0
    %v1059 = vpop.f32.mrf.mxu0
    %v1060 = vadd.f32 0.0, %v1059
    %v1061 = vpop.f32.mrf.mxu0
    %1062 = vdwg.mxu0
    %s1063 = scalar_lea.vmem %s8, 128
    %v1064 = vld [vmem:[%s1063] sm:$0xff]
    %v1065 = vld [vmem:[%s1063 + $0x8] sm:$0xff]
    %v1066 = vld [vmem:[%s1063 + $0x10] sm:$0xff]
    %v1067 = vld [vmem:[%s1063 + $0x18] sm:$0xff]
    %v1068 = vld [vmem:[%s1063 + $0x20] sm:$0xff]
    %v1069 = vld [vmem:[%s1063 + $0x28] sm:$0xff]
    %v1070 = vld [vmem:[%s1063 + $0x30] sm:$0xff]
    %v1071 = vld [vmem:[%s1063 + $0x38] sm:$0xff]
    %v1072 = vld [vmem:[%s1063 + $0x40] sm:$0xff]
    %v1073 = vld [vmem:[%s1063 + $0x48] sm:$0xff]
    %v1074 = vld [vmem:[%s1063 + $0x50] sm:$0xff]
    %v1075 = vld [vmem:[%s1063 + $0x58] sm:$0xff]
    %v1076 = vld [vmem:[%s1063 + $0x60] sm:$0xff]
    %v1077 = vld [vmem:[%s1063 + $0x68] sm:$0xff]
    %v1078 = vld [vmem:[%s1063 + $0x70] sm:$0xff]
    %v1079 = vld [vmem:[%s1063 + $0x78] sm:$0xff]
    %s1080 = scalar_lea.vmem %s9, 1
    %v1081 = vld [vmem:[%s1080] sm:$0x1]
    %1082 = vmatprep.subr.mxu0 0.0
    %1083 = vmatpush1.msra.mxu0 %v1079
    %1084 = vmatprep.subr.mxu0 0.0
    %1085 = vmatpush1.msra.mxu0 %v1078
    %1086 = vmatprep.subr.mxu0 0.0
    %1087 = vmatpush1.msra.mxu0 %v1077
    %1088 = vmatprep.subr.mxu0 0.0
    %1089 = vmatpush1.msra.mxu0 %v1076
    %1090 = vmatprep.subr.mxu0 0.0
    %1091 = vmatpush1.msra.mxu0 %v1075
    %1092 = vmatprep.subr.mxu0 0.0
    %1093 = vmatpush1.msra.mxu0 %v1074
    %1094 = vmatprep.subr.mxu0 0.0
    %1095 = vmatpush1.msra.mxu0 %v1073
    %1096 = vmatprep.subr.mxu0 0.0
    %1097 = vmatpush1.msra.mxu0 %v1072
    %1098 = vmatprep.subr.mxu0 0.0
    %1099 = vmatpush1.msra.mxu0 %v1071
    %1100 = vmatprep.subr.mxu0 0.0
    %1101 = vmatpush1.msra.mxu0 %v1070
    %1102 = vmatprep.subr.mxu0 0.0
    %1103 = vmatpush1.msra.mxu0 %v1069
    %1104 = vmatprep.subr.mxu0 0.0
    %1105 = vmatpush1.msra.mxu0 %v1068
    %1106 = vmatprep.subr.mxu0 0.0
    %1107 = vmatpush1.msra.mxu0 %v1067
    %1108 = vmatprep.subr.mxu0 0.0
    %1109 = vmatpush1.msra.mxu0 %v1066
    %1110 = vmatprep.subr.mxu0 0.0
    %1111 = vmatpush1.msra.mxu0 %v1065
    %1112 = vmatprep.subr.mxu0 0.0
    %1113 = vmatpush1.msra.mxu0 %v1064
    %1114 = vmatprep.subr.mxu0 0.0
    %1115 = vmatpush2.msra.mxu0 0.0
    %1116 = vmatprep.subr.mxu0 0.0
    %1117 = vmatpush2.msra.mxu0 0.0
    %1118 = vmatprep.subr.mxu0 0.0
    %1119 = vmatpush2.msra.mxu0 0.0
    %1120 = vmatprep.subr.mxu0 0.0
    %1121 = vmatpush2.msra.mxu0 0.0
    %1122 = vmatprep.subr.mxu0 0.0
    %1123 = vmatpush2.msra.mxu0 0.0
    %1124 = vmatprep.subr.mxu0 0.0
    %1125 = vmatpush2.msra.mxu0 0.0
    %1126 = vmatprep.subr.mxu0 0.0
    %1127 = vmatpush2.msra.mxu0 0.0
    %1128 = vmatprep.subr.mxu0 0.0
    %1129 = vmatpush2.msra.mxu0 0.0
    %1130 = vmatprep.subr.mxu0 0.0
    %1131 = vmatpush2.msra.mxu0 0.0
    %1132 = vmatprep.subr.mxu0 0.0
    %1133 = vmatpush2.msra.mxu0 0.0
    %1134 = vmatprep.subr.mxu0 0.0
    %1135 = vmatpush2.msra.mxu0 0.0
    %1136 = vmatprep.subr.mxu0 0.0
    %1137 = vmatpush2.msra.mxu0 0.0
    %1138 = vmatprep.subr.mxu0 0.0
    %1139 = vmatpush2.msra.mxu0 0.0
    %1140 = vmatprep.subr.mxu0 0.0
    %1141 = vmatpush2.msra.mxu0 0.0
    %1142 = vmatprep.subr.mxu0 0.0
    %1143 = vmatpush2.msra.mxu0 0.0
    %1144 = vmatprep.subr.mxu0 0.0
    %1145 = vmatpush2.msra.mxu0 0.0
    %1146 = vmatprep.mubr.f32.mxu0 0.0
    %1147 = vmatmul.mubr.f32.gmra.mxu0 %v1041
    %v1148 = vpop.f32.mrf.mxu0
    %v1149 = vadd.f32 0.0, %v1148
    %v1150 = vpop.f32.mrf.mxu0
    %1151 = vmatprep.mubr.f32.mxu0 0.0
    %1152 = vmatmul.mubr.f32.gmra.mxu0 %v1044
    %v1153 = vpop.f32.mrf.mxu0
    %v1154 = vadd.f32 0.0, %v1153
    %v1155 = vpop.f32.mrf.mxu0
    %1156 = vmatprep.mubr.f32.mxu0 0.0
    %1157 = vmatmul.mubr.f32.gmra.mxu0 %v1049
    %v1158 = vpop.f32.mrf.mxu0
    %v1159 = vadd.f32 0.0, %v1158
    %v1160 = vpop.f32.mrf.mxu0
    %1161 = vmatprep.mubr.f32.mxu0 0.0
    %1162 = vmatmul.mubr.f32.gmra.mxu0 %v1052
    %v1163 = vpop.f32.mrf.mxu0
    %v1164 = vadd.f32 0.0, %v1163
    %v1165 = vpop.f32.mrf.mxu0
    %1166 = vmatprep.mubr.f32.mxu0 0.0
    %1167 = vmatmul.mubr.f32.gmra.mxu0 %v1057
    %v1168 = vpop.f32.mrf.mxu0
    %v1169 = vadd.f32 0.0, %v1168
    %v1170 = vpop.f32.mrf.mxu0
    %1171 = vmatprep.mubr.f32.mxu0 0.0
    %1172 = vmatmul.mubr.f32.gmra.mxu0 %v1060
    %v1173 = vpop.f32.mrf.mxu0
    %v1174 = vadd.f32 0.0, %v1173
    %v1175 = vpop.f32.mrf.mxu0
    %1176 = vdwg.mxu0
    %1177 = vmatprep.subr.mxu0 0.0
    %1178 = vmatpush1.xpose.msra.mxu0 0.0
    %1179 = vmatprep.subr.mxu0 0.0
    %1180 = vmatpush1.xpose.msra.mxu0 0.0
    %1181 = vmatprep.subr.mxu0 0.0
    %1182 = vmatpush1.xpose.msra.mxu0 0.0
    %1183 = vmatprep.subr.mxu0 0.0
    %1184 = vmatpush1.xpose.msra.mxu0 0.0
    %1185 = vmatprep.subr.mxu0 0.0
    %1186 = vmatpush1.xpose.msra.mxu0 0.0
    %1187 = vmatprep.subr.mxu0 0.0
    %1188 = vmatpush1.xpose.msra.mxu0 0.0
    %1189 = vmatprep.subr.mxu0 0.0
    %1190 = vmatpush1.xpose.msra.mxu0 0.0
    %1191 = vmatprep.subr.mxu0 0.0
    %1192 = vmatpush1.xpose.msra.mxu0 0.0
    %1193 = vmatprep.subr.mxu0 0.0
    %1194 = vmatpush1.xpose.msra.mxu0 0.0
    %1195 = vmatprep.subr.mxu0 0.0
    %1196 = vmatpush1.xpose.msra.mxu0 0.0
    %1197 = vmatprep.subr.mxu0 0.0
    %1198 = vmatpush1.xpose.msra.mxu0 %v1060
    %1199 = vmatprep.subr.mxu0 0.0
    %1200 = vmatpush1.xpose.msra.mxu0 %v1057
    %1201 = vmatprep.subr.mxu0 0.0
    %1202 = vmatpush1.xpose.msra.mxu0 %v1052
    %1203 = vmatprep.subr.mxu0 0.0
    %1204 = vmatpush1.xpose.msra.mxu0 %v1049
    %1205 = vmatprep.subr.mxu0 0.0
    %1206 = vmatpush1.xpose.msra.mxu0 %v1044
    %1207 = vmatprep.subr.mxu0 0.0
    %1208 = vmatpush1.xpose.msra.mxu0 %v1041
    %1209 = vmatprep.subr.mxu0 0.0
    %1210 = vmatpush2.xpose.msra.mxu0 0.0
    %1211 = vmatprep.subr.mxu0 0.0
    %1212 = vmatpush2.xpose.msra.mxu0 0.0
    %1213 = vmatprep.subr.mxu0 0.0
    %1214 = vmatpush2.xpose.msra.mxu0 0.0
    %1215 = vmatprep.subr.mxu0 0.0
    %1216 = vmatpush2.xpose.msra.mxu0 0.0
    %1217 = vmatprep.subr.mxu0 0.0
    %1218 = vmatpush2.xpose.msra.mxu0 0.0
    %1219 = vmatprep.subr.mxu0 0.0
    %1220 = vmatpush2.xpose.msra.mxu0 0.0
    %1221 = vmatprep.subr.mxu0 0.0
    %1222 = vmatpush2.xpose.msra.mxu0 0.0
    %1223 = vmatprep.subr.mxu0 0.0
    %1224 = vmatpush2.xpose.msra.mxu0 0.0
    %1225 = vmatprep.subr.mxu0 0.0
    %1226 = vmatpush2.xpose.msra.mxu0 0.0
    %1227 = vmatprep.subr.mxu0 0.0
    %1228 = vmatpush2.xpose.msra.mxu0 0.0
    %1229 = vmatprep.subr.mxu0 0.0
    %1230 = vmatpush2.xpose.msra.mxu0 0.0
    %1231 = vmatprep.subr.mxu0 0.0
    %1232 = vmatpush2.xpose.msra.mxu0 0.0
    %1233 = vmatprep.subr.mxu0 0.0
    %1234 = vmatpush2.xpose.msra.mxu0 0.0
    %1235 = vmatprep.subr.mxu0 0.0
    %1236 = vmatpush2.xpose.msra.mxu0 0.0
    %1237 = vmatprep.subr.mxu0 0.0
    %1238 = vmatpush2.xpose.msra.mxu0 0.0
    %1239 = vmatprep.subr.mxu0 0.0
    %1240 = vmatpush2.xpose.msra.mxu0 0.0
    %1241 = vmatprep.mubr.f32.mxu0 0.0
    %1242 = vmatmul.mubr.f32.gmra.mxu0 %v1081
    %v1243 = vpop.f32.mrf.mxu0
    %v1244 = vadd.f32 0.0, %v1243
    %v1245 = vpop.f32.mrf.mxu0
    %1246 = vdwg.mxu0
    %1248 = vset.pattern.permute.xlu0 0
    %1249 = vperm.xlu0 %1248, %v1149
    %v1250 = vpop.permute.xlu0 %1249
    %1253 = vset.pattern.permute.xlu0 0
    %1254 = vperm.xlu0 %1253, %v1154
    %v1255 = vpop.permute.xlu0 %1254
    %1258 = vset.pattern.permute.xlu0 0
    %1259 = vperm.xlu0 %1258, %v1159
    %v1260 = vpop.permute.xlu0 %1259
    %1263 = vset.pattern.permute.xlu0 0
    %1264 = vperm.xlu0 %1263, %v1164
    %v1265 = vpop.permute.xlu0 %1264
    %1268 = vset.pattern.permute.xlu0 0
    %1269 = vperm.xlu0 %1268, %v1169
    %v1270 = vpop.permute.xlu0 %1269
    %1273 = vset.pattern.permute.xlu0 0
    %1274 = vperm.xlu0 %1273, %v1174
    %v1275 = vpop.permute.xlu0 %1274
    %v1277 = vlaneseq
    %v1278 = vshrl.u32 %v1277, 7
    %v1279 = vsub.s32 0, %v1278
    %v1280 = vrot.slane %v1244, %v1279
    %v1281 = vadd.f32 %v1250, %v1280
    %v1282 = vadd.f32 %v1255, %v1280
    %v1283 = vadd.f32 %v1260, %v1280
    %v1284 = vadd.f32 %v1265, %v1280
    %v1285 = vadd.f32 %v1270, %v1280
    %v1286 = vadd.f32 %v1275, %v1280
    %vm1287 = vcmp.gt.f32.partialorder %v1281, 0.0
    %vm1288 = vcmp.gt.f32.partialorder %v1282, 0.0
    %vm1289 = vcmp.gt.f32.partialorder %v1283, 0.0
    %vm1290 = vcmp.gt.f32.partialorder %v1284, 0.0
    %vm1291 = vcmp.gt.f32.partialorder %v1285, 0.0
    %vm1292 = vcmp.gt.f32.partialorder %v1286, 0.0
    %v1293 = vmul.f32 %v1281, 0.2
    %v1294 = vmul.f32 %v1282, 0.2
    %v1295 = vmul.f32 %v1283, 0.2
    %v1296 = vmul.f32 %v1284, 0.2
    %v1297 = vmul.f32 %v1285, 0.2
    %v1298 = vmul.f32 %v1286, 0.2
    %v1299 = vsel %vm1287, %v1281, %v1293
    %v1300 = vsel %vm1288, %v1282, %v1294
    %v1301 = vsel %vm1289, %v1283, %v1295
    %v1302 = vsel %vm1290, %v1284, %v1296
    %v1303 = vsel %vm1291, %v1285, %v1297
    %v1304 = vsel %vm1292, %v1286, %v1298
    %v1305 = vsel %vm386, %v1299, -9e+15
    %v1306 = vsel %vm387, %v1300, -9e+15
    %v1307 = vsel %vm388, %v1301, -9e+15
    %v1308 = vsel %vm389, %v1302, -9e+15
    %v1309 = vsel %vm390, %v1303, -9e+15
    %v1310 = vsel %vm391, %v1304, -9e+15
    %v1311 = vsel %vm398, %v1305, -inf
    %1312 = vmax.xlane.f32.xlu0 %v1311
    %v1313 = vpop.xlane.xlu0 %1312
    %v1314 = vsel %vm398, %v1306, -inf
    %1315 = vmax.xlane.f32.xlu0 %v1314
    %v1316 = vpop.xlane.xlu0 %1315
    %v1317 = vsel %vm398, %v1307, -inf
    %1318 = vmax.xlane.f32.xlu0 %v1317
    %v1319 = vpop.xlane.xlu0 %1318
    %v1320 = vsel %vm398, %v1308, -inf
    %1321 = vmax.xlane.f32.xlu0 %v1320
    %v1322 = vpop.xlane.xlu0 %1321
    %v1323 = vsel %vm398, %v1309, -inf
    %1324 = vmax.xlane.f32.xlu0 %v1323
    %v1325 = vpop.xlane.xlu0 %1324
    %v1326 = vsel %vm398, %v1310, -inf
    %1327 = vmax.xlane.f32.xlu0 %v1326
    %v1328 = vpop.xlane.xlu0 %1327
    %v1329 = vsub.f32 %v1305, %v1313
    %v1330 = vsub.f32 %v1306, %v1316
    %v1331 = vsub.f32 %v1307, %v1319
    %v1332 = vsub.f32 %v1308, %v1322
    %v1333 = vsub.f32 %v1309, %v1325
    %v1334 = vsub.f32 %v1310, %v1328
    %v1335 = vmul.f32 %v1329, 1.442695
    %v1336 = vpow.pop %v1335
    %v1337 = vmul.f32 %v1330, 1.442695
    %v1338 = vpow.pop %v1337
    %v1339 = vmul.f32 %v1331, 1.442695
    %v1340 = vpow.pop %v1339
    %v1341 = vmul.f32 %v1332, 1.442695
    %v1342 = vpow.pop %v1341
    %v1343 = vmul.f32 %v1333, 1.442695
    %v1344 = vpow.pop %v1343
    %v1345 = vmul.f32 %v1334, 1.442695
    %v1346 = vpow.pop %v1345
    %v1347 = vsel %vm398, %v1336, 0.0
    %1348 = vadd.xlane.f32.xlu0 %v1347
    %v1349 = vpop.xlane.xlu0 %1348
    %v1350 = vsel %vm398, %v1338, 0.0
    %1351 = vadd.xlane.f32.xlu0 %v1350
    %v1352 = vpop.xlane.xlu0 %1351
    %v1353 = vsel %vm398, %v1340, 0.0
    %1354 = vadd.xlane.f32.xlu0 %v1353
    %v1355 = vpop.xlane.xlu0 %1354
    %v1356 = vsel %vm398, %v1342, 0.0
    %1357 = vadd.xlane.f32.xlu0 %v1356
    %v1358 = vpop.xlane.xlu0 %1357
    %v1359 = vsel %vm398, %v1344, 0.0
    %1360 = vadd.xlane.f32.xlu0 %v1359
    %v1361 = vpop.xlane.xlu0 %1360
    %v1362 = vsel %vm398, %v1346, 0.0
    %1363 = vadd.xlane.f32.xlu0 %v1362
    %v1364 = vpop.xlane.xlu0 %1363
    %v1365 = vrcp.pop %v1349
    %v1366 = vrcp.pop %v1352
    %v1367 = vrcp.pop %v1355
    %v1368 = vrcp.pop %v1358
    %v1369 = vrcp.pop %v1361
    %v1370 = vrcp.pop %v1364
    %v1371 = vmul.f32 %v1336, %v1365
    %v1372 = vmul.f32 %v1338, %v1366
    %v1373 = vmul.f32 %v1340, %v1367
    %v1374 = vmul.f32 %v1342, %v1368
    %v1375 = vmul.f32 %v1344, %v1369
    %v1376 = vmul.f32 %v1346, %v1370
    %v1377 = vmul.f32 %v1371, %v477
    %v1378 = vmul.f32 %v1372, %v478
    %v1379 = vmul.f32 %v1373, %v479
    %v1380 = vmul.f32 %v1374, %v480
    %v1381 = vmul.f32 %v1375, %v481
    %v1382 = vmul.f32 %v1376, %v482
    %v1383 = vpack.c.bf16 %v1378, %v1377
    %v1384 = vpack.c.bf16 %v1380, %v1379
    %v1385 = vpack.c.bf16 %v1382, %v1381
    %v1386 = vpack.c.bf16 %v1044, %v1041
    %v1387 = vpack.c.bf16 %v1052, %v1049
    %v1388 = vpack.c.bf16 %v1060, %v1057
    %v1390 = vsel %vm398, %v1383, 0
    %v1393 = vsel %vm398, %v1384, 0
    %v1396 = vsel %vm398, %v1385, 0
    %1398 = vmatprep.subr.bf16.mxu0 0
    %1399 = vmatpush1.bf16.msra.mxu0 0
    %1400 = vmatprep.subr.bf16.mxu0 0
    %1401 = vmatpush1.bf16.msra.mxu0 0
    %1402 = vmatprep.subr.bf16.mxu0 0
    %1403 = vmatpush1.bf16.msra.mxu0 0
    %1404 = vmatprep.subr.bf16.mxu0 0
    %1405 = vmatpush1.bf16.msra.mxu0 0
    %1406 = vmatprep.subr.bf16.mxu0 0
    %1407 = vmatpush1.bf16.msra.mxu0 0
    %1408 = vmatprep.subr.bf16.mxu0 0
    %1409 = vmatpush1.bf16.msra.mxu0 %v1388
    %1410 = vmatprep.subr.bf16.mxu0 0
    %1411 = vmatpush1.bf16.msra.mxu0 %v1387
    %1412 = vmatprep.subr.bf16.mxu0 0
    %1413 = vmatpush1.bf16.msra.mxu0 %v1386
    %1414 = vmatprep.subr.bf16.mxu0 0
    %1415 = vmatpush2.bf16.msra.mxu0 0
    %1416 = vmatprep.subr.bf16.mxu0 0
    %1417 = vmatpush2.bf16.msra.mxu0 0
    %1418 = vmatprep.subr.bf16.mxu0 0
    %1419 = vmatpush2.bf16.msra.mxu0 0
    %1420 = vmatprep.subr.bf16.mxu0 0
    %1421 = vmatpush2.bf16.msra.mxu0 0
    %1422 = vmatprep.subr.bf16.mxu0 0
    %1423 = vmatpush2.bf16.msra.mxu0 0
    %1424 = vmatprep.subr.bf16.mxu0 0
    %1425 = vmatpush2.bf16.msra.mxu0 0
    %1426 = vmatprep.subr.bf16.mxu0 0
    %1427 = vmatpush2.bf16.msra.mxu0 0
    %1428 = vmatprep.subr.bf16.mxu0 0
    %1429 = vmatpush2.bf16.msra.mxu0 0
    %1430 = vmatprep.mubr.bf16.mxu0 0
    %1431 = vmatmul.mubr.bf16.gmra.mxu0 %v1390
    %v1432 = vpop.f32.mrf.mxu0
    %v1433 = vadd.f32 0.0, %v1432
    %v1434 = vpop.f32.mrf.mxu0
    %v1435 = vpop.f32.mrf.mxu0
    %v1436 = vadd.f32 0.0, %v1435
    %v1437 = vpop.f32.mrf.mxu0
    %1438 = vmatprep.mubr.bf16.mxu0 0
    %1439 = vmatmul.mubr.bf16.gmra.mxu0 %v1393
    %v1440 = vpop.f32.mrf.mxu0
    %v1441 = vadd.f32 0.0, %v1440
    %v1442 = vpop.f32.mrf.mxu0
    %v1443 = vpop.f32.mrf.mxu0
    %v1444 = vadd.f32 0.0, %v1443
    %v1445 = vpop.f32.mrf.mxu0
    %1446 = vmatprep.mubr.bf16.mxu0 0
    %1447 = vmatmul.mubr.bf16.gmra.mxu0 %v1396
    %v1448 = vpop.f32.mrf.mxu0
    %v1449 = vadd.f32 0.0, %v1448
    %v1450 = vpop.f32.mrf.mxu0
    %v1451 = vpop.f32.mrf.mxu0
    %v1452 = vadd.f32 0.0, %v1451
    %v1453 = vpop.f32.mrf.mxu0
    %1454 = vdwg.mxu0
    %vm1455 = vcmp.gt.f32.partialorder %v1433, 0.0
    %vm1456 = vcmp.gt.f32.partialorder %v1436, 0.0
    %vm1457 = vcmp.gt.f32.partialorder %v1441, 0.0
    %vm1458 = vcmp.gt.f32.partialorder %v1444, 0.0
    %vm1459 = vcmp.gt.f32.partialorder %v1449, 0.0
    %vm1460 = vcmp.gt.f32.partialorder %v1452, 0.0
    %v1461 = vmin.f32 %v1433, 0.0
    %v1462 = vmin.f32 %v1436, 0.0
    %v1463 = vmin.f32 %v1441, 0.0
    %v1464 = vmin.f32 %v1444, 0.0
    %v1465 = vmin.f32 %v1449, 0.0
    %v1466 = vmin.f32 %v1452, 0.0
    %v1467 = vmul.f32 %v1461, 1.442695
    %v1468 = vpow.pop %v1467
    %v1469 = vmul.f32 %v1462, 1.442695
    %v1470 = vpow.pop %v1469
    %v1471 = vmul.f32 %v1463, 1.442695
    %v1472 = vpow.pop %v1471
    %v1473 = vmul.f32 %v1464, 1.442695
    %v1474 = vpow.pop %v1473
    %v1475 = vmul.f32 %v1465, 1.442695
    %v1476 = vpow.pop %v1475
    %v1477 = vmul.f32 %v1466, 1.442695
    %v1478 = vpow.pop %v1477
    %v1479 = vsub.f32 %v1468, 1.0
    %v1480 = vsub.f32 %v1470, 1.0
    %v1481 = vsub.f32 %v1472, 1.0
    %v1482 = vsub.f32 %v1474, 1.0
    %v1483 = vsub.f32 %v1476, 1.0
    %v1484 = vsub.f32 %v1478, 1.0
    %v1485 = vsel %vm1455, %v1433, %v1479
    %v1486 = vsel %vm1456, %v1436, %v1480
    %v1487 = vsel %vm1457, %v1441, %v1481
    %v1488 = vsel %vm1458, %v1444, %v1482
    %v1489 = vsel %vm1459, %v1449, %v1483
    %v1490 = vsel %vm1460, %v1452, %v1484
    %v1491 = vpack.c.bf16 %v1486, %v1485
    %v1492 = vpack.c.bf16 %v1488, %v1487
    %v1493 = vpack.c.bf16 %v1490, %v1489
    %s1494 = scalar_lea.vmem %s10, 128
    %v1495 = vld [vmem:[%s1494] sm:$0xff]
    %v1496 = vld [vmem:[%s1494 + $0x8] sm:$0xff]
    %v1497 = vld [vmem:[%s1494 + $0x10] sm:$0xff]
    %v1498 = vld [vmem:[%s1494 + $0x18] sm:$0xff]
    %v1499 = vld [vmem:[%s1494 + $0x20] sm:$0xff]
    %v1500 = vld [vmem:[%s1494 + $0x28] sm:$0xff]
    %v1501 = vld [vmem:[%s1494 + $0x30] sm:$0xff]
    %v1502 = vld [vmem:[%s1494 + $0x38] sm:$0xff]
    %v1503 = vld [vmem:[%s1494 + $0x40] sm:$0xff]
    %v1504 = vld [vmem:[%s1494 + $0x48] sm:$0xff]
    %v1505 = vld [vmem:[%s1494 + $0x50] sm:$0xff]
    %v1506 = vld [vmem:[%s1494 + $0x58] sm:$0xff]
    %v1507 = vld [vmem:[%s1494 + $0x60] sm:$0xff]
    %v1508 = vld [vmem:[%s1494 + $0x68] sm:$0xff]
    %v1509 = vld [vmem:[%s1494 + $0x70] sm:$0xff]
    %v1510 = vld [vmem:[%s1494 + $0x78] sm:$0xff]
    %v1511 = vpack.c.bf16 %v1496, %v1495
    %v1512 = vpack.c.bf16 %v1498, %v1497
    %v1513 = vpack.c.bf16 %v1500, %v1499
    %v1514 = vpack.c.bf16 %v1502, %v1501
    %v1515 = vpack.c.bf16 %v1504, %v1503
    %v1516 = vpack.c.bf16 %v1506, %v1505
    %v1517 = vpack.c.bf16 %v1508, %v1507
    %v1518 = vpack.c.bf16 %v1510, %v1509
    %1519 = vmatprep.subr.bf16.mxu0 0
    %1520 = vmatpush1.bf16.msra.mxu0 %v1518
    %1521 = vmatprep.subr.bf16.mxu0 0
    %1522 = vmatpush1.bf16.msra.mxu0 %v1517
    %1523 = vmatprep.subr.bf16.mxu0 0
    %1524 = vmatpush1.bf16.msra.mxu0 %v1516
    %1525 = vmatprep.subr.bf16.mxu0 0
    %1526 = vmatpush1.bf16.msra.mxu0 %v1515
    %1527 = vmatprep.subr.bf16.mxu0 0
    %1528 = vmatpush1.bf16.msra.mxu0 %v1514
    %1529 = vmatprep.subr.bf16.mxu0 0
    %1530 = vmatpush1.bf16.msra.mxu0 %v1513
    %1531 = vmatprep.subr.bf16.mxu0 0
    %1532 = vmatpush1.bf16.msra.mxu0 %v1512
    %1533 = vmatprep.subr.bf16.mxu0 0
    %1534 = vmatpush1.bf16.msra.mxu0 %v1511
    %1535 = vmatprep.subr.bf16.mxu0 0
    %1536 = vmatpush2.bf16.msra.mxu0 0
    %1537 = vmatprep.subr.bf16.mxu0 0
    %1538 = vmatpush2.bf16.msra.mxu0 0
    %1539 = vmatprep.subr.bf16.mxu0 0
    %1540 = vmatpush2.bf16.msra.mxu0 0
    %1541 = vmatprep.subr.bf16.mxu0 0
    %1542 = vmatpush2.bf16.msra.mxu0 0
    %1543 = vmatprep.subr.bf16.mxu0 0
    %1544 = vmatpush2.bf16.msra.mxu0 0
    %1545 = vmatprep.subr.bf16.mxu0 0
    %1546 = vmatpush2.bf16.msra.mxu0 0
    %1547 = vmatprep.subr.bf16.mxu0 0
    %1548 = vmatpush2.bf16.msra.mxu0 0
    %1549 = vmatprep.subr.bf16.mxu0 0
    %1550 = vmatpush2.bf16.msra.mxu0 0
    %1551 = vmatprep.mubr.bf16.mxu0 0
    %1552 = vmatmul.mubr.bf16.gmra.mxu0 %v1491
    %v1553 = vpop.f32.mrf.mxu0
    %v1554 = vadd.f32 0.0, %v1553
    %v1555 = vpop.f32.mrf.mxu0
    %v1556 = vpop.f32.mrf.mxu0
    %v1557 = vadd.f32 0.0, %v1556
    %v1558 = vpop.f32.mrf.mxu0
    %1559 = vmatprep.mubr.bf16.mxu0 0
    %1560 = vmatmul.mubr.bf16.gmra.mxu0 %v1492
    %v1561 = vpop.f32.mrf.mxu0
    %v1562 = vadd.f32 0.0, %v1561
    %v1563 = vpop.f32.mrf.mxu0
    %v1564 = vpop.f32.mrf.mxu0
    %v1565 = vadd.f32 0.0, %v1564
    %v1566 = vpop.f32.mrf.mxu0
    %1567 = vmatprep.mubr.bf16.mxu0 0
    %1568 = vmatmul.mubr.bf16.gmra.mxu0 %v1493
    %v1569 = vpop.f32.mrf.mxu0
    %v1570 = vadd.f32 0.0, %v1569
    %v1571 = vpop.f32.mrf.mxu0
    %v1572 = vpop.f32.mrf.mxu0
    %v1573 = vadd.f32 0.0, %v1572
    %v1574 = vpop.f32.mrf.mxu0
    %1575 = vdwg.mxu0
    %1576 = vmatprep.subr.bf16.mxu0 0
    %1577 = vmatpush1.bf16.msra.mxu0 %v998
    %1578 = vmatprep.subr.bf16.mxu0 0
    %1579 = vmatpush1.bf16.msra.mxu0 %v997
    %1580 = vmatprep.subr.bf16.mxu0 0
    %1581 = vmatpush1.bf16.msra.mxu0 %v996
    %1582 = vmatprep.subr.bf16.mxu0 0
    %1583 = vmatpush1.bf16.msra.mxu0 %v995
    %1584 = vmatprep.subr.bf16.mxu0 0
    %1585 = vmatpush1.bf16.msra.mxu0 %v994
    %1586 = vmatprep.subr.bf16.mxu0 0
    %1587 = vmatpush1.bf16.msra.mxu0 %v993
    %1588 = vmatprep.subr.bf16.mxu0 0
    %1589 = vmatpush1.bf16.msra.mxu0 %v992
    %1590 = vmatprep.subr.bf16.mxu0 0
    %1591 = vmatpush1.bf16.msra.mxu0 %v991
    %1592 = vmatprep.subr.bf16.mxu0 0
    %1593 = vmatpush2.bf16.msra.mxu0 0
    %1594 = vmatprep.subr.bf16.mxu0 0
    %1595 = vmatpush2.bf16.msra.mxu0 0
    %1596 = vmatprep.subr.bf16.mxu0 0
    %1597 = vmatpush2.bf16.msra.mxu0 0
    %1598 = vmatprep.subr.bf16.mxu0 0
    %1599 = vmatpush2.bf16.msra.mxu0 0
    %1600 = vmatprep.subr.bf16.mxu0 0
    %1601 = vmatpush2.bf16.msra.mxu0 0
    %1602 = vmatprep.subr.bf16.mxu0 0
    %1603 = vmatpush2.bf16.msra.mxu0 0
    %1604 = vmatprep.subr.bf16.mxu0 0
    %1605 = vmatpush2.bf16.msra.mxu0 0
    %1606 = vmatprep.subr.bf16.mxu0 0
    %1607 = vmatpush2.bf16.msra.mxu0 0
    %1608 = vmatprep.mubr.bf16.mxu0 0
    %1609 = vmatmul.mubr.bf16.gmra.mxu0 %v972
    %v1610 = vpop.f32.mrf.mxu0
    %v1611 = vadd.f32 %v1554, %v1610
    %v1612 = vpop.f32.mrf.mxu0
    %v1613 = vpop.f32.mrf.mxu0
    %v1614 = vadd.f32 %v1557, %v1613
    %v1615 = vpop.f32.mrf.mxu0
    %1616 = vmatprep.mubr.bf16.mxu0 0
    %1617 = vmatmul.mubr.bf16.gmra.mxu0 %v973
    %v1618 = vpop.f32.mrf.mxu0
    %v1619 = vadd.f32 %v1562, %v1618
    %v1620 = vpop.f32.mrf.mxu0
    %v1621 = vpop.f32.mrf.mxu0
    %v1622 = vadd.f32 %v1565, %v1621
    %v1623 = vpop.f32.mrf.mxu0
    %1624 = vmatprep.mubr.bf16.mxu0 0
    %1625 = vmatmul.mubr.bf16.gmra.mxu0 %v974
    %v1626 = vpop.f32.mrf.mxu0
    %v1627 = vadd.f32 %v1570, %v1626
    %v1628 = vpop.f32.mrf.mxu0
    %v1629 = vpop.f32.mrf.mxu0
    %v1630 = vadd.f32 %v1573, %v1629
    %v1631 = vpop.f32.mrf.mxu0
    %1632 = vdwg.mxu0
    %v1633 = vld [vmem:[%s11] sm:$0xff]
    %v1634 = vld [vmem:[%s11 + $0x8] sm:$0xff]
    %v1635 = vld [vmem:[%s11 + $0x10] sm:$0xff]
    %v1636 = vld [vmem:[%s11 + $0x18] sm:$0xff]
    %v1637 = vld [vmem:[%s11 + $0x20] sm:$0xff]
    %v1638 = vld [vmem:[%s11 + $0x28] sm:$0xff]
    %v1639 = vld [vmem:[%s11 + $0x30] sm:$0xff]
    %v1640 = vld [vmem:[%s11 + $0x38] sm:$0xff]
    %v1641 = vld [vmem:[%s11 + $0x40] sm:$0xff]
    %v1642 = vld [vmem:[%s11 + $0x48] sm:$0xff]
    %v1643 = vld [vmem:[%s11 + $0x50] sm:$0xff]
    %v1644 = vld [vmem:[%s11 + $0x58] sm:$0xff]
    %v1645 = vld [vmem:[%s11 + $0x60] sm:$0xff]
    %v1646 = vld [vmem:[%s11 + $0x68] sm:$0xff]
    %v1647 = vld [vmem:[%s11 + $0x70] sm:$0xff]
    %v1648 = vld [vmem:[%s11 + $0x78] sm:$0xff]
    %v1649 = vld [vmem:[%s12] sm:$0x1]
    %1650 = vmatprep.subr.mxu0 0.0
    %1651 = vmatpush1.msra.mxu0 %v1648
    %1652 = vmatprep.subr.mxu0 0.0
    %1653 = vmatpush1.msra.mxu0 %v1647
    %1654 = vmatprep.subr.mxu0 0.0
    %1655 = vmatpush1.msra.mxu0 %v1646
    %1656 = vmatprep.subr.mxu0 0.0
    %1657 = vmatpush1.msra.mxu0 %v1645
    %1658 = vmatprep.subr.mxu0 0.0
    %1659 = vmatpush1.msra.mxu0 %v1644
    %1660 = vmatprep.subr.mxu0 0.0
    %1661 = vmatpush1.msra.mxu0 %v1643
    %1662 = vmatprep.subr.mxu0 0.0
    %1663 = vmatpush1.msra.mxu0 %v1642
    %1664 = vmatprep.subr.mxu0 0.0
    %1665 = vmatpush1.msra.mxu0 %v1641
    %1666 = vmatprep.subr.mxu0 0.0
    %1667 = vmatpush1.msra.mxu0 %v1640
    %1668 = vmatprep.subr.mxu0 0.0
    %1669 = vmatpush1.msra.mxu0 %v1639
    %1670 = vmatprep.subr.mxu0 0.0
    %1671 = vmatpush1.msra.mxu0 %v1638
    %1672 = vmatprep.subr.mxu0 0.0
    %1673 = vmatpush1.msra.mxu0 %v1637
    %1674 = vmatprep.subr.mxu0 0.0
    %1675 = vmatpush1.msra.mxu0 %v1636
    %1676 = vmatprep.subr.mxu0 0.0
    %1677 = vmatpush1.msra.mxu0 %v1635
    %1678 = vmatprep.subr.mxu0 0.0
    %1679 = vmatpush1.msra.mxu0 %v1634
    %1680 = vmatprep.subr.mxu0 0.0
    %1681 = vmatpush1.msra.mxu0 %v1633
    %1682 = vmatprep.subr.mxu0 0.0
    %1683 = vmatpush2.msra.mxu0 0.0
    %1684 = vmatprep.subr.mxu0 0.0
    %1685 = vmatpush2.msra.mxu0 0.0
    %1686 = vmatprep.subr.mxu0 0.0
    %1687 = vmatpush2.msra.mxu0 0.0
    %1688 = vmatprep.subr.mxu0 0.0
    %1689 = vmatpush2.msra.mxu0 0.0
    %1690 = vmatprep.subr.mxu0 0.0
    %1691 = vmatpush2.msra.mxu0 0.0
    %1692 = vmatprep.subr.mxu0 0.0
    %1693 = vmatpush2.msra.mxu0 0.0
    %1694 = vmatprep.subr.mxu0 0.0
    %1695 = vmatpush2.msra.mxu0 0.0
    %1696 = vmatprep.subr.mxu0 0.0
    %1697 = vmatpush2.msra.mxu0 0.0
    %1698 = vmatprep.subr.mxu0 0.0
    %1699 = vmatpush2.msra.mxu0 0.0
    %1700 = vmatprep.subr.mxu0 0.0
    %1701 = vmatpush2.msra.mxu0 0.0
    %1702 = vmatprep.subr.mxu0 0.0
    %1703 = vmatpush2.msra.mxu0 0.0
    %1704 = vmatprep.subr.mxu0 0.0
    %1705 = vmatpush2.msra.mxu0 0.0
    %1706 = vmatprep.subr.mxu0 0.0
    %1707 = vmatpush2.msra.mxu0 0.0
    %1708 = vmatprep.subr.mxu0 0.0
    %1709 = vmatpush2.msra.mxu0 0.0
    %1710 = vmatprep.subr.mxu0 0.0
    %1711 = vmatpush2.msra.mxu0 0.0
    %1712 = vmatprep.subr.mxu0 0.0
    %1713 = vmatpush2.msra.mxu0 0.0
    %1714 = vmatprep.mubr.f32.mxu0 0.0
    %1715 = vmatmul.mubr.f32.gmra.mxu0 %v1611
    %v1716 = vpop.f32.mrf.mxu0
    %v1717 = vadd.f32 0.0, %v1716
    %v1718 = vpop.f32.mrf.mxu0
    %1719 = vmatprep.mubr.f32.mxu0 0.0
    %1720 = vmatmul.mubr.f32.gmra.mxu0 %v1614
    %v1721 = vpop.f32.mrf.mxu0
    %v1722 = vadd.f32 0.0, %v1721
    %v1723 = vpop.f32.mrf.mxu0
    %1724 = vmatprep.mubr.f32.mxu0 0.0
    %1725 = vmatmul.mubr.f32.gmra.mxu0 %v1619
    %v1726 = vpop.f32.mrf.mxu0
    %v1727 = vadd.f32 0.0, %v1726
    %v1728 = vpop.f32.mrf.mxu0
    %1729 = vmatprep.mubr.f32.mxu0 0.0
    %1730 = vmatmul.mubr.f32.gmra.mxu0 %v1622
    %v1731 = vpop.f32.mrf.mxu0
    %v1732 = vadd.f32 0.0, %v1731
    %v1733 = vpop.f32.mrf.mxu0
    %1734 = vmatprep.mubr.f32.mxu0 0.0
    %1735 = vmatmul.mubr.f32.gmra.mxu0 %v1627
    %v1736 = vpop.f32.mrf.mxu0
    %v1737 = vadd.f32 0.0, %v1736
    %v1738 = vpop.f32.mrf.mxu0
    %1739 = vmatprep.mubr.f32.mxu0 0.0
    %1740 = vmatmul.mubr.f32.gmra.mxu0 %v1630
    %v1741 = vpop.f32.mrf.mxu0
    %v1742 = vadd.f32 0.0, %v1741
    %v1743 = vpop.f32.mrf.mxu0
    %1744 = vdwg.mxu0
    %1745 = vmatprep.subr.mxu0 0.0
    %1746 = vmatpush1.xpose.msra.mxu0 0.0
    %1747 = vmatprep.subr.mxu0 0.0
    %1748 = vmatpush1.xpose.msra.mxu0 0.0
    %1749 = vmatprep.subr.mxu0 0.0
    %1750 = vmatpush1.xpose.msra.mxu0 0.0
    %1751 = vmatprep.subr.mxu0 0.0
    %1752 = vmatpush1.xpose.msra.mxu0 0.0
    %1753 = vmatprep.subr.mxu0 0.0
    %1754 = vmatpush1.xpose.msra.mxu0 0.0
    %1755 = vmatprep.subr.mxu0 0.0
    %1756 = vmatpush1.xpose.msra.mxu0 0.0
    %1757 = vmatprep.subr.mxu0 0.0
    %1758 = vmatpush1.xpose.msra.mxu0 0.0
    %1759 = vmatprep.subr.mxu0 0.0
    %1760 = vmatpush1.xpose.msra.mxu0 0.0
    %1761 = vmatprep.subr.mxu0 0.0
    %1762 = vmatpush1.xpose.msra.mxu0 0.0
    %1763 = vmatprep.subr.mxu0 0.0
    %1764 = vmatpush1.xpose.msra.mxu0 0.0
    %1765 = vmatprep.subr.mxu0 0.0
    %1766 = vmatpush1.xpose.msra.mxu0 %v1630
    %1767 = vmatprep.subr.mxu0 0.0
    %1768 = vmatpush1.xpose.msra.mxu0 %v1627
    %1769 = vmatprep.subr.mxu0 0.0
    %1770 = vmatpush1.xpose.msra.mxu0 %v1622
    %1771 = vmatprep.subr.mxu0 0.0
    %1772 = vmatpush1.xpose.msra.mxu0 %v1619
    %1773 = vmatprep.subr.mxu0 0.0
    %1774 = vmatpush1.xpose.msra.mxu0 %v1614
    %1775 = vmatprep.subr.mxu0 0.0
    %1776 = vmatpush1.xpose.msra.mxu0 %v1611
    %1777 = vmatprep.subr.mxu0 0.0
    %1778 = vmatpush2.xpose.msra.mxu0 0.0
    %1779 = vmatprep.subr.mxu0 0.0
    %1780 = vmatpush2.xpose.msra.mxu0 0.0
    %1781 = vmatprep.subr.mxu0 0.0
    %1782 = vmatpush2.xpose.msra.mxu0 0.0
    %1783 = vmatprep.subr.mxu0 0.0
    %1784 = vmatpush2.xpose.msra.mxu0 0.0
    %1785 = vmatprep.subr.mxu0 0.0
    %1786 = vmatpush2.xpose.msra.mxu0 0.0
    %1787 = vmatprep.subr.mxu0 0.0
    %1788 = vmatpush2.xpose.msra.mxu0 0.0
    %1789 = vmatprep.subr.mxu0 0.0
    %1790 = vmatpush2.xpose.msra.mxu0 0.0
    %1791 = vmatprep.subr.mxu0 0.0
    %1792 = vmatpush2.xpose.msra.mxu0 0.0
    %1793 = vmatprep.subr.mxu0 0.0
    %1794 = vmatpush2.xpose.msra.mxu0 0.0
    %1795 = vmatprep.subr.mxu0 0.0
    %1796 = vmatpush2.xpose.msra.mxu0 0.0
    %1797 = vmatprep.subr.mxu0 0.0
    %1798 = vmatpush2.xpose.msra.mxu0 0.0
    %1799 = vmatprep.subr.mxu0 0.0
    %1800 = vmatpush2.xpose.msra.mxu0 0.0
    %1801 = vmatprep.subr.mxu0 0.0
    %1802 = vmatpush2.xpose.msra.mxu0 0.0
    %1803 = vmatprep.subr.mxu0 0.0
    %1804 = vmatpush2.xpose.msra.mxu0 0.0
    %1805 = vmatprep.subr.mxu0 0.0
    %1806 = vmatpush2.xpose.msra.mxu0 0.0
    %1807 = vmatprep.subr.mxu0 0.0
    %1808 = vmatpush2.xpose.msra.mxu0 0.0
    %1809 = vmatprep.mubr.f32.mxu0 0.0
    %1810 = vmatmul.mubr.f32.gmra.mxu0 %v1649
    %v1811 = vpop.f32.mrf.mxu0
    %v1812 = vadd.f32 0.0, %v1811
    %v1813 = vpop.f32.mrf.mxu0
    %1814 = vdwg.mxu0
    %1816 = vset.pattern.permute.xlu0 0
    %1817 = vperm.xlu0 %1816, %v1717
    %v1818 = vpop.permute.xlu0 %1817
    %1821 = vset.pattern.permute.xlu0 0
    %1822 = vperm.xlu0 %1821, %v1722
    %v1823 = vpop.permute.xlu0 %1822
    %1826 = vset.pattern.permute.xlu0 0
    %1827 = vperm.xlu0 %1826, %v1727
    %v1828 = vpop.permute.xlu0 %1827
    %1831 = vset.pattern.permute.xlu0 0
    %1832 = vperm.xlu0 %1831, %v1732
    %v1833 = vpop.permute.xlu0 %1832
    %1836 = vset.pattern.permute.xlu0 0
    %1837 = vperm.xlu0 %1836, %v1737
    %v1838 = vpop.permute.xlu0 %1837
    %1841 = vset.pattern.permute.xlu0 0
    %1842 = vperm.xlu0 %1841, %v1742
    %v1843 = vpop.permute.xlu0 %1842
    %v1845 = vlaneseq
    %v1846 = vshrl.u32 %v1845, 7
    %v1847 = vsub.s32 0, %v1846
    %v1848 = vrot.slane %v1812, %v1847
    %v1849 = vadd.f32 %v1818, %v1848
    %v1850 = vadd.f32 %v1823, %v1848
    %v1851 = vadd.f32 %v1828, %v1848
    %v1852 = vadd.f32 %v1833, %v1848
    %v1853 = vadd.f32 %v1838, %v1848
    %v1854 = vadd.f32 %v1843, %v1848
    %vm1855 = vcmp.gt.f32.partialorder %v1849, 0.0
    %vm1856 = vcmp.gt.f32.partialorder %v1850, 0.0
    %vm1857 = vcmp.gt.f32.partialorder %v1851, 0.0
    %vm1858 = vcmp.gt.f32.partialorder %v1852, 0.0
    %vm1859 = vcmp.gt.f32.partialorder %v1853, 0.0
    %vm1860 = vcmp.gt.f32.partialorder %v1854, 0.0
    %v1861 = vmul.f32 %v1849, 0.2
    %v1862 = vmul.f32 %v1850, 0.2
    %v1863 = vmul.f32 %v1851, 0.2
    %v1864 = vmul.f32 %v1852, 0.2
    %v1865 = vmul.f32 %v1853, 0.2
    %v1866 = vmul.f32 %v1854, 0.2
    %v1867 = vsel %vm1855, %v1849, %v1861
    %v1868 = vsel %vm1856, %v1850, %v1862
    %v1869 = vsel %vm1857, %v1851, %v1863
    %v1870 = vsel %vm1858, %v1852, %v1864
    %v1871 = vsel %vm1859, %v1853, %v1865
    %v1872 = vsel %vm1860, %v1854, %v1866
    %v1873 = vsel %vm386, %v1867, -9e+15
    %v1874 = vsel %vm387, %v1868, -9e+15
    %v1875 = vsel %vm388, %v1869, -9e+15
    %v1876 = vsel %vm389, %v1870, -9e+15
    %v1877 = vsel %vm390, %v1871, -9e+15
    %v1878 = vsel %vm391, %v1872, -9e+15
    %v1879 = vsel %vm398, %v1873, -inf
    %1880 = vmax.xlane.f32.xlu0 %v1879
    %v1881 = vpop.xlane.xlu0 %1880
    %v1882 = vsel %vm398, %v1874, -inf
    %1883 = vmax.xlane.f32.xlu0 %v1882
    %v1884 = vpop.xlane.xlu0 %1883
    %v1885 = vsel %vm398, %v1875, -inf
    %1886 = vmax.xlane.f32.xlu0 %v1885
    %v1887 = vpop.xlane.xlu0 %1886
    %v1888 = vsel %vm398, %v1876, -inf
    %1889 = vmax.xlane.f32.xlu0 %v1888
    %v1890 = vpop.xlane.xlu0 %1889
    %v1891 = vsel %vm398, %v1877, -inf
    %1892 = vmax.xlane.f32.xlu0 %v1891
    %v1893 = vpop.xlane.xlu0 %1892
    %v1894 = vsel %vm398, %v1878, -inf
    %1895 = vmax.xlane.f32.xlu0 %v1894
    %v1896 = vpop.xlane.xlu0 %1895
    %v1897 = vsub.f32 %v1873, %v1881
    %v1898 = vsub.f32 %v1874, %v1884
    %v1899 = vsub.f32 %v1875, %v1887
    %v1900 = vsub.f32 %v1876, %v1890
    %v1901 = vsub.f32 %v1877, %v1893
    %v1902 = vsub.f32 %v1878, %v1896
    %v1903 = vmul.f32 %v1897, 1.442695
    %v1904 = vpow.pop %v1903
    %v1905 = vmul.f32 %v1898, 1.442695
    %v1906 = vpow.pop %v1905
    %v1907 = vmul.f32 %v1899, 1.442695
    %v1908 = vpow.pop %v1907
    %v1909 = vmul.f32 %v1900, 1.442695
    %v1910 = vpow.pop %v1909
    %v1911 = vmul.f32 %v1901, 1.442695
    %v1912 = vpow.pop %v1911
    %v1913 = vmul.f32 %v1902, 1.442695
    %v1914 = vpow.pop %v1913
    %v1915 = vsel %vm398, %v1904, 0.0
    %1916 = vadd.xlane.f32.xlu0 %v1915
    %v1917 = vpop.xlane.xlu0 %1916
    %v1918 = vsel %vm398, %v1906, 0.0
    %1919 = vadd.xlane.f32.xlu0 %v1918
    %v1920 = vpop.xlane.xlu0 %1919
    %v1921 = vsel %vm398, %v1908, 0.0
    %1922 = vadd.xlane.f32.xlu0 %v1921
    %v1923 = vpop.xlane.xlu0 %1922
    %v1924 = vsel %vm398, %v1910, 0.0
    %1925 = vadd.xlane.f32.xlu0 %v1924
    %v1926 = vpop.xlane.xlu0 %1925
    %v1927 = vsel %vm398, %v1912, 0.0
    %1928 = vadd.xlane.f32.xlu0 %v1927
    %v1929 = vpop.xlane.xlu0 %1928
    %v1930 = vsel %vm398, %v1914, 0.0
    %1931 = vadd.xlane.f32.xlu0 %v1930
    %v1932 = vpop.xlane.xlu0 %1931
    %v1933 = vrcp.pop %v1917
    %v1934 = vrcp.pop %v1920
    %v1935 = vrcp.pop %v1923
    %v1936 = vrcp.pop %v1926
    %v1937 = vrcp.pop %v1929
    %v1938 = vrcp.pop %v1932
    %v1939 = vmul.f32 %v1904, %v1933
    %v1940 = vmul.f32 %v1906, %v1934
    %v1941 = vmul.f32 %v1908, %v1935
    %v1942 = vmul.f32 %v1910, %v1936
    %v1943 = vmul.f32 %v1912, %v1937
    %v1944 = vmul.f32 %v1914, %v1938
    %v1945 = vmul.f32 %v1939, %v477
    %v1946 = vmul.f32 %v1940, %v478
    %v1947 = vmul.f32 %v1941, %v479
    %v1948 = vmul.f32 %v1942, %v480
    %v1949 = vmul.f32 %v1943, %v481
    %v1950 = vmul.f32 %v1944, %v482
    %v1951 = vpack.c.bf16 %v1946, %v1945
    %v1952 = vpack.c.bf16 %v1948, %v1947
    %v1953 = vpack.c.bf16 %v1950, %v1949
    %v1954 = vpack.c.bf16 %v1614, %v1611
    %v1955 = vpack.c.bf16 %v1622, %v1619
    %v1956 = vpack.c.bf16 %v1630, %v1627
    %v1958 = vsel %vm398, %v1951, 0
    %v1961 = vsel %vm398, %v1952, 0
    %v1964 = vsel %vm398, %v1953, 0
    %1966 = vmatprep.subr.bf16.mxu0 0
    %1967 = vmatpush1.bf16.msra.mxu0 0
    %1968 = vmatprep.subr.bf16.mxu0 0
    %1969 = vmatpush1.bf16.msra.mxu0 0
    %1970 = vmatprep.subr.bf16.mxu0 0
    %1971 = vmatpush1.bf16.msra.mxu0 0
    %1972 = vmatprep.subr.bf16.mxu0 0
    %1973 = vmatpush1.bf16.msra.mxu0 0
    %1974 = vmatprep.subr.bf16.mxu0 0
    %1975 = vmatpush1.bf16.msra.mxu0 0
    %1976 = vmatprep.subr.bf16.mxu0 0
    %1977 = vmatpush1.bf16.msra.mxu0 %v1956
    %1978 = vmatprep.subr.bf16.mxu0 0
    %1979 = vmatpush1.bf16.msra.mxu0 %v1955
    %1980 = vmatprep.subr.bf16.mxu0 0
    %1981 = vmatpush1.bf16.msra.mxu0 %v1954
    %1982 = vmatprep.subr.bf16.mxu0 0
    %1983 = vmatpush2.bf16.msra.mxu0 0
    %1984 = vmatprep.subr.bf16.mxu0 0
    %1985 = vmatpush2.bf16.msra.mxu0 0
    %1986 = vmatprep.subr.bf16.mxu0 0
    %1987 = vmatpush2.bf16.msra.mxu0 0
    %1988 = vmatprep.subr.bf16.mxu0 0
    %1989 = vmatpush2.bf16.msra.mxu0 0
    %1990 = vmatprep.subr.bf16.mxu0 0
    %1991 = vmatpush2.bf16.msra.mxu0 0
    %1992 = vmatprep.subr.bf16.mxu0 0
    %1993 = vmatpush2.bf16.msra.mxu0 0
    %1994 = vmatprep.subr.bf16.mxu0 0
    %1995 = vmatpush2.bf16.msra.mxu0 0
    %1996 = vmatprep.subr.bf16.mxu0 0
    %1997 = vmatpush2.bf16.msra.mxu0 0
    %1998 = vmatprep.mubr.bf16.mxu0 0
    %1999 = vmatmul.mubr.bf16.gmra.mxu0 %v1958
    %v2000 = vpop.f32.mrf.mxu0
    %v2001 = vadd.f32 0.0, %v2000
    %v2002 = vpop.f32.mrf.mxu0
    %v2003 = vpop.f32.mrf.mxu0
    %v2004 = vadd.f32 0.0, %v2003
    %v2005 = vpop.f32.mrf.mxu0
    %2006 = vmatprep.mubr.bf16.mxu0 0
    %2007 = vmatmul.mubr.bf16.gmra.mxu0 %v1961
    %v2008 = vpop.f32.mrf.mxu0
    %v2009 = vadd.f32 0.0, %v2008
    %v2010 = vpop.f32.mrf.mxu0
    %v2011 = vpop.f32.mrf.mxu0
    %v2012 = vadd.f32 0.0, %v2011
    %v2013 = vpop.f32.mrf.mxu0
    %2014 = vmatprep.mubr.bf16.mxu0 0
    %2015 = vmatmul.mubr.bf16.gmra.mxu0 %v1964
    %v2016 = vpop.f32.mrf.mxu0
    %v2017 = vadd.f32 0.0, %v2016
    %v2018 = vpop.f32.mrf.mxu0
    %v2019 = vpop.f32.mrf.mxu0
    %v2020 = vadd.f32 0.0, %v2019
    %v2021 = vpop.f32.mrf.mxu0
    %2022 = vdwg.mxu0
    %vm2023 = vcmp.gt.f32.partialorder %v2001, 0.0
    %vm2024 = vcmp.gt.f32.partialorder %v2004, 0.0
    %vm2025 = vcmp.gt.f32.partialorder %v2009, 0.0
    %vm2026 = vcmp.gt.f32.partialorder %v2012, 0.0
    %vm2027 = vcmp.gt.f32.partialorder %v2017, 0.0
    %vm2028 = vcmp.gt.f32.partialorder %v2020, 0.0
    %v2029 = vmin.f32 %v2001, 0.0
    %v2030 = vmin.f32 %v2004, 0.0
    %v2031 = vmin.f32 %v2009, 0.0
    %v2032 = vmin.f32 %v2012, 0.0
    %v2033 = vmin.f32 %v2017, 0.0
    %v2034 = vmin.f32 %v2020, 0.0
    %v2035 = vmul.f32 %v2029, 1.442695
    %v2036 = vpow.pop %v2035
    %v2037 = vmul.f32 %v2030, 1.442695
    %v2038 = vpow.pop %v2037
    %v2039 = vmul.f32 %v2031, 1.442695
    %v2040 = vpow.pop %v2039
    %v2041 = vmul.f32 %v2032, 1.442695
    %v2042 = vpow.pop %v2041
    %v2043 = vmul.f32 %v2033, 1.442695
    %v2044 = vpow.pop %v2043
    %v2045 = vmul.f32 %v2034, 1.442695
    %v2046 = vpow.pop %v2045
    %v2047 = vsub.f32 %v2036, 1.0
    %v2048 = vsub.f32 %v2038, 1.0
    %v2049 = vsub.f32 %v2040, 1.0
    %v2050 = vsub.f32 %v2042, 1.0
    %v2051 = vsub.f32 %v2044, 1.0
    %v2052 = vsub.f32 %v2046, 1.0
    %v2053 = vsel %vm2023, %v2001, %v2047
    %v2054 = vsel %vm2024, %v2004, %v2048
    %v2055 = vsel %vm2025, %v2009, %v2049
    %v2056 = vsel %vm2026, %v2012, %v2050
    %v2057 = vsel %vm2027, %v2017, %v2051
    %v2058 = vsel %vm2028, %v2020, %v2052
    %v2059 = vld [vmem:[%s2] sm:$0xff]
    %v2060 = vld [vmem:[%s2 + $0x8] sm:$0xff]
    %v2061 = vld [vmem:[%s2 + $0x10] sm:$0xff]
    %v2062 = vld [vmem:[%s2 + $0x18] sm:$0xff]
    %v2063 = vld [vmem:[%s2 + $0x20] sm:$0xff]
    %v2064 = vld [vmem:[%s2 + $0x28] sm:$0xff]
    %2066 = vset.pattern.permute.xlu0 0
    %2067 = vperm.xlu0 %2066, %v2059
    %v2068 = vpop.permute.xlu0 %2067
    %2071 = vset.pattern.permute.xlu0 0
    %2072 = vperm.xlu0 %2071, %v2060
    %v2073 = vpop.permute.xlu0 %2072
    %2076 = vset.pattern.permute.xlu0 0
    %2077 = vperm.xlu0 %2076, %v2061
    %v2078 = vpop.permute.xlu0 %2077
    %2081 = vset.pattern.permute.xlu0 0
    %2082 = vperm.xlu0 %2081, %v2062
    %v2083 = vpop.permute.xlu0 %2082
    %2086 = vset.pattern.permute.xlu0 0
    %2087 = vperm.xlu0 %2086, %v2063
    %v2088 = vpop.permute.xlu0 %2087
    %2091 = vset.pattern.permute.xlu0 0
    %2092 = vperm.xlu0 %2091, %v2064
    %v2093 = vpop.permute.xlu0 %2092
    %v2095 = vmul.f32 %v2068, %v477
    %v2096 = vmul.f32 %v2073, %v478
    %v2097 = vmul.f32 %v2078, %v479
    %v2098 = vmul.f32 %v2083, %v480
    %v2099 = vmul.f32 %v2088, %v481
    %v2100 = vmul.f32 %v2093, %v482
    %v2101 = vld [vmem:[%s3] sm:$0x1]
    %v2103 = vlaneseq
    %v2104 = vshrl.u32 %v2103, 7
    %v2105 = vsub.s32 0, %v2104
    %v2106 = vrot.slane %v2101, %v2105
    %v2108 = vmul.f32 %v2095, %v2106
    %v2109 = vmul.f32 %v2096, %v2106
    %v2110 = vmul.f32 %v2097, %v2106
    %v2111 = vmul.f32 %v2098, %v2106
    %v2112 = vmul.f32 %v2099, %v2106
    %v2113 = vmul.f32 %v2100, %v2106
    %v2114 = vld [vmem:[%s13] sm:$0xff]
    %v2115 = vld [vmem:[%s13 + $0x8] sm:$0xff]
    %v2116 = vld [vmem:[%s13 + $0x10] sm:$0xff]
    %v2117 = vld [vmem:[%s13 + $0x18] sm:$0xff]
    %v2118 = vpack.c.bf16 %v2115, %v2114
    %v2119 = vpack.c.bf16 %v2117, %v2116
    %2120 = vmatprep.subr.bf16.mxu0 0
    %2121 = vmatpush1.bf16.msra.mxu0 0
    %2122 = vmatprep.subr.bf16.mxu0 0
    %2123 = vmatpush1.bf16.msra.mxu0 0
    %2124 = vmatprep.subr.bf16.mxu0 0
    %2125 = vmatpush1.bf16.msra.mxu0 0
    %2126 = vmatprep.subr.bf16.mxu0 0
    %2127 = vmatpush1.bf16.msra.mxu0 0
    %2128 = vmatprep.subr.bf16.mxu0 0
    %2129 = vmatpush1.bf16.msra.mxu0 0
    %2130 = vmatprep.subr.bf16.mxu0 0
    %2131 = vmatpush1.bf16.msra.mxu0 0
    %2132 = vmatprep.subr.bf16.mxu0 0
    %2133 = vmatpush1.bf16.msra.mxu0 %v2119
    %2134 = vmatprep.subr.bf16.mxu0 0
    %2135 = vmatpush1.bf16.msra.mxu0 %v2118
    %2136 = vmatprep.subr.bf16.mxu0 0
    %2137 = vmatpush2.bf16.msra.mxu0 0
    %2138 = vmatprep.subr.bf16.mxu0 0
    %2139 = vmatpush2.bf16.msra.mxu0 0
    %2140 = vmatprep.subr.bf16.mxu0 0
    %2141 = vmatpush2.bf16.msra.mxu0 0
    %2142 = vmatprep.subr.bf16.mxu0 0
    %2143 = vmatpush2.bf16.msra.mxu0 0
    %2144 = vmatprep.subr.bf16.mxu0 0
    %2145 = vmatpush2.bf16.msra.mxu0 0
    %2146 = vmatprep.subr.bf16.mxu0 0
    %2147 = vmatpush2.bf16.msra.mxu0 0
    %2148 = vmatprep.subr.bf16.mxu0 0
    %2149 = vmatpush2.bf16.msra.mxu0 0
    %2150 = vmatprep.subr.bf16.mxu0 0
    %2151 = vmatpush2.bf16.msra.mxu0 0
    %2152 = vmatprep.mubr.bf16.mxu0 0
    %2153 = vmatmul.mubr.bf16.gmra.mxu0 %v72
    %v2154 = vpop.f32.mrf.mxu0
    %v2155 = vadd.f32 0.0, %v2154
    %v2156 = vpop.f32.mrf.mxu0
    %v2157 = vpop.f32.mrf.mxu0
    %v2158 = vadd.f32 0.0, %v2157
    %v2159 = vpop.f32.mrf.mxu0
    %2160 = vmatprep.mubr.bf16.mxu0 0
    %2161 = vmatmul.mubr.bf16.gmra.mxu0 %v75
    %v2162 = vpop.f32.mrf.mxu0
    %v2163 = vadd.f32 0.0, %v2162
    %v2164 = vpop.f32.mrf.mxu0
    %v2165 = vpop.f32.mrf.mxu0
    %v2166 = vadd.f32 0.0, %v2165
    %v2167 = vpop.f32.mrf.mxu0
    %2168 = vmatprep.mubr.bf16.mxu0 0
    %2169 = vmatmul.mubr.bf16.gmra.mxu0 %v78
    %v2170 = vpop.f32.mrf.mxu0
    %v2171 = vadd.f32 0.0, %v2170
    %v2172 = vpop.f32.mrf.mxu0
    %v2173 = vpop.f32.mrf.mxu0
    %v2174 = vadd.f32 0.0, %v2173
    %v2175 = vpop.f32.mrf.mxu0
    %2176 = vdwg.mxu0
    %v2177 = vpack.c.bf16 %v2109, %v2108
    %v2178 = vpack.c.bf16 %v2111, %v2110
    %v2179 = vpack.c.bf16 %v2113, %v2112
    %v2180 = vpack.c.bf16 %v2158, %v2155
    %v2181 = vpack.c.bf16 %v2166, %v2163
    %v2182 = vpack.c.bf16 %v2174, %v2171
    %v2184 = vsel %vm398, %v2177, 0
    %v2187 = vsel %vm398, %v2178, 0
    %v2190 = vsel %vm398, %v2179, 0
    %2192 = vmatprep.subr.bf16.mxu0 0
    %2193 = vmatpush1.bf16.msra.mxu0 0
    %2194 = vmatprep.subr.bf16.mxu0 0
    %2195 = vmatpush1.bf16.msra.mxu0 0
    %2196 = vmatprep.subr.bf16.mxu0 0
    %2197 = vmatpush1.bf16.msra.mxu0 0
    %2198 = vmatprep.subr.bf16.mxu0 0
    %2199 = vmatpush1.bf16.msra.mxu0 0
    %2200 = vmatprep.subr.bf16.mxu0 0
    %2201 = vmatpush1.bf16.msra.mxu0 0
    %2202 = vmatprep.subr.bf16.mxu0 0
    %2203 = vmatpush1.bf16.msra.mxu0 %v2182
    %2204 = vmatprep.subr.bf16.mxu0 0
    %2205 = vmatpush1.bf16.msra.mxu0 %v2181
    %2206 = vmatprep.subr.bf16.mxu0 0
    %2207 = vmatpush1.bf16.msra.mxu0 %v2180
    %2208 = vmatprep.subr.bf16.mxu0 0
    %2209 = vmatpush2.bf16.msra.mxu0 0
    %2210 = vmatprep.subr.bf16.mxu0 0
    %2211 = vmatpush2.bf16.msra.mxu0 0
    %2212 = vmatprep.subr.bf16.mxu0 0
    %2213 = vmatpush2.bf16.msra.mxu0 0
    %2214 = vmatprep.subr.bf16.mxu0 0
    %2215 = vmatpush2.bf16.msra.mxu0 0
    %2216 = vmatprep.subr.bf16.mxu0 0
    %2217 = vmatpush2.bf16.msra.mxu0 0
    %2218 = vmatprep.subr.bf16.mxu0 0
    %2219 = vmatpush2.bf16.msra.mxu0 0
    %2220 = vmatprep.subr.bf16.mxu0 0
    %2221 = vmatpush2.bf16.msra.mxu0 0
    %2222 = vmatprep.subr.bf16.mxu0 0
    %2223 = vmatpush2.bf16.msra.mxu0 0
    %2224 = vmatprep.mubr.bf16.mxu0 0
    %2225 = vmatmul.mubr.bf16.gmra.mxu0 %v2184
    %v2226 = vpop.f32.mrf.mxu0
    %v2227 = vadd.f32 0.0, %v2226
    %v2228 = vpop.f32.mrf.mxu0
    %v2229 = vpop.f32.mrf.mxu0
    %v2230 = vadd.f32 0.0, %v2229
    %v2231 = vpop.f32.mrf.mxu0
    %2232 = vmatprep.mubr.bf16.mxu0 0
    %2233 = vmatmul.mubr.bf16.gmra.mxu0 %v2187
    %v2234 = vpop.f32.mrf.mxu0
    %v2235 = vadd.f32 0.0, %v2234
    %v2236 = vpop.f32.mrf.mxu0
    %v2237 = vpop.f32.mrf.mxu0
    %v2238 = vadd.f32 0.0, %v2237
    %v2239 = vpop.f32.mrf.mxu0
    %2240 = vmatprep.mubr.bf16.mxu0 0
    %2241 = vmatmul.mubr.bf16.gmra.mxu0 %v2190
    %v2242 = vpop.f32.mrf.mxu0
    %v2243 = vadd.f32 0.0, %v2242
    %v2244 = vpop.f32.mrf.mxu0
    %v2245 = vpop.f32.mrf.mxu0
    %v2246 = vadd.f32 0.0, %v2245
    %v2247 = vpop.f32.mrf.mxu0
    %2248 = vdwg.mxu0
    %v2249 = vmax.f32 %v2227, 0.0
    %v2250 = vmax.f32 %v2230, 0.0
    %v2251 = vmax.f32 %v2235, 0.0
    %v2252 = vmax.f32 %v2238, 0.0
    %v2253 = vmax.f32 %v2243, 0.0
    %v2254 = vmax.f32 %v2246, 0.0
    %v2255 = vmul.f32 %v2053, 0.6
    %v2256 = vmul.f32 %v2054, 0.6
    %v2257 = vmul.f32 %v2055, 0.6
    %v2258 = vmul.f32 %v2056, 0.6
    %v2259 = vmul.f32 %v2057, 0.6
    %v2260 = vmul.f32 %v2058, 0.6
    %v2261 = vmul.f32 %v2249, 0.4
    %v2262 = vmul.f32 %v2250, 0.4
    %v2263 = vmul.f32 %v2251, 0.4
    %v2264 = vmul.f32 %v2252, 0.4
    %v2265 = vmul.f32 %v2253, 0.4
    %v2266 = vmul.f32 %v2254, 0.4
    %v2267 = vadd.f32 %v2255, %v2261
    %v2268 = vadd.f32 %v2256, %v2262
    %v2269 = vadd.f32 %v2257, %v2263
    %v2270 = vadd.f32 %v2258, %v2264
    %v2271 = vadd.f32 %v2259, %v2265
    %v2272 = vadd.f32 %v2260, %v2266
    %2273 = vst [vmem:[#allocation2] sm:$0xff] %v2267
    %2274 = vst [vmem:[#allocation2 + $0x8] sm:$0xff] %v2268
    %2275 = vst [vmem:[#allocation2 + $0x10] sm:$0xff] %v2269
    %2276 = vst [vmem:[#allocation2 + $0x18] sm:$0xff] %v2270
    %2277 = vst [vmem:[#allocation2 + $0x20] sm:$0xff] %v2271
    %2278 = vst [vmem:[#allocation2 + $0x28] sm:$0xff] %v2272
    // Predicated region
    $region58: #{tpu_custom_call.1} parent=1 // pred_check
      _
    $region59: #{tpu_custom_call.1} parent=1 // pred_check_branch
      %2280 = sbr.rel (0) target = $region61
    $region60: #{tpu_custom_call.1} parent=1 // pred_region
      %s2282 = ssub.s32 768, 768
      %2283 = vsyncadd [#allocation3], %s2282
      %s2284 = sshll.u32 [#allocation2], 4
      %s2285 = int_to_ptr.vmem [resolvable:$true] %s2284
      %2290 = dma.vmem_to_hbm [thread:$0]  %s2285, 768, %s14, [#allocation3], 128, 128, 8
    $region61: #{tpu_custom_call.1} parent=1 // pred_fallthru
      _
    // Predicated region
    $region62: #{tpu_custom_call.1} parent=1 // pred_check
      _
    $region63: #{tpu_custom_call.1} parent=1 // pred_check_branch
      %2292 = sbr.rel (0) target = $region65
    $region64: #{tpu_custom_call.1} parent=1 // pred_region
      %2293 = dma.done [#allocation3], 768
    $region65: #{tpu_custom_call.1} parent=1 // pred_fallthru
      _
    %2294 = vsyncpa [#allocation3], 1

</llo_original>
